<compile_context>
chip_gen: v6e
topology: v6e:2x2x1
jax: 0.10.0
libtpu: 0.0.40
codegen_flags: <defaults>
</compile_context>

<pallas_src>
import math

import jax
import jax.numpy as jnp
from jax import lax
from jax.experimental import pallas as pl
from jax.experimental.pallas import tpu as pltpu


def _text_encoder_head_kernel(seq_ref, cls_ref, ev1_ref, m1_ref, ev2_ref,
                              m2_ref, w_ref, b_ref, out_ref, acc_ref):
    """One (batch tile, seq tile) grid step.

    seq_ref : (TB, TS, H) bf16   seq tile
    cls_ref : (TB, H)     f32
    ev*_ref : (TB, E)     int32  event token positions
    m*_ref  : (TB, E)     f32    event masks
    w_ref   : (3, H, H)   bf16   trans_fc weight (resident, single-buffered)
    b_ref   : (1, H)      f32    trans_fc bias   (resident, single-buffered)
    out_ref : (TB, 3H)    f32    packed [event_rep | e1_rep | e2_rep]
    acc_ref : (TB, 2, H)  f32    e1/e2 accumulators across S tiles
    """
    s_idx = pl.program_id(1)
    TB, TS, H = seq_ref.shape
    E = ev1_ref.shape[1]

    @pl.when(s_idx == 0)
    def _init():
        acc_ref[...] = jnp.zeros_like(acc_ref)

    # Merged masked gather: one shared iota, pre-sum over E, one MXU pass.
    s_start = s_idx * TS
    iota = lax.broadcasted_iota(jnp.int32, (TB, E, TS), 2) + s_start
    oh1 = (iota == ev1_ref[...][:, :, None]).astype(jnp.float32) \
        * m1_ref[...][:, :, None]
    oh2 = (iota == ev2_ref[...][:, :, None]).astype(jnp.float32) \
        * m2_ref[...][:, :, None]
    w1 = jnp.sum(oh1, axis=1)                                   # (TB, TS)
    w2 = jnp.sum(oh2, axis=1)                                   # (TB, TS)
    w_comb = jnp.concatenate([w1[:, None, :], w2[:, None, :]],
                             axis=1).astype(jnp.bfloat16)        # (TB, 2, TS)
    acc_ref[...] += jnp.einsum('bks,bsh->bkh', w_comb, seq_ref[...],
                               preferred_element_type=jnp.float32)

    # Epilogue on the last S tile: split-K FC + LeakyReLU, lane-dense store.
    @pl.when(s_idx == pl.num_programs(1) - 1)
    def _epilogue():
        e1 = acc_ref[:, 0, :]
        e2 = acc_ref[:, 1, :]
        # trans_fc(concat([cls, e1, e2])) as three accumulated K=H dots on
        # static slices of the weight (no (TB,3H) staging scratch).
        z = jnp.dot(cls_ref[...].astype(jnp.bfloat16), w_ref[0],
                    preferred_element_type=jnp.float32)
        z = z + jnp.dot(e1.astype(jnp.bfloat16), w_ref[1],
                        preferred_element_type=jnp.float32)
        z = z + jnp.dot(e2.astype(jnp.bfloat16), w_ref[2],
                        preferred_element_type=jnp.float32)
        z = z + b_ref[...]
        rep = jnp.where(z >= 0.0, z, 0.01 * z)                  # LeakyReLU
        out_ref[...] = jnp.concatenate([rep, e1, e2], axis=-1)   # (TB, 3H)


def _vmem_limit_bytes():
    """Generation-aware VMEM budget (~3/4 of physical, capped at 100 MiB)."""
    try:
        cap = getattr(pltpu.get_tpu_info(), "vmem_capacity_bytes", 128 << 20)
    except Exception:
        cap = 128 << 20
    return int(min((cap * 3) // 4, 100 << 20))


def _pick_tiles(B, S, H, vmem_limit):
    """Largest batch tile dividing B; shrink the S tile first to fit VMEM."""
    tb = next(c for c in (128, 64, 32, 16, 8, 4, 2, 1) if B % c == 0)
    ts = S
    budget = vmem_limit // 2            # budget for the double-buffered seq tile

    def seq_bytes(tb_, ts_):
        return 2 * tb_ * ts_ * H * 2    # 2 pipeline buffers, bf16

    while seq_bytes(tb, ts) > budget:
        if ts % 16 == 0:                # keep ts a multiple of 8, dividing S
            ts //= 2
        elif tb > 8 and B % (tb // 2) == 0:
            tb //= 2
        else:
            break
    return tb, ts


def text_encoder_head(seq_out, cls_out, events1, mask_events1,
                      events2, mask_events2, w_fc, b_fc, *, tb=None, ts=None):
    B, S, H = seq_out.shape
    E = events1.shape[1]

    vmem_limit = _vmem_limit_bytes()
    auto_tb, auto_ts = _pick_tiles(B, S, H, vmem_limit)
    tb = auto_tb if tb is None else tb
    ts = auto_ts if ts is None else ts
    assert B % tb == 0 and S % ts == 0
    grid = (B // tb, S // ts)

    # Advisory cost estimate for XLA's scheduler around this custom call.
    flops = 4 * B * S * H + 6 * B * H * H + 4 * B * E * S
    bytes_accessed = (2 * B * S * H + 4 * B * H + 16 * B * E
                      + 2 * 3 * H * H + 4 * H + 4 * B * 3 * H)
    cost = pl.CostEstimate(flops=flops, transcendentals=0,
                           bytes_accessed=bytes_accessed)

    in_specs = [
        pl.BlockSpec((tb, ts, H), lambda i, s: (i, s, 0)),   # seq (bf16)
        pl.BlockSpec((tb, H), lambda i, s: (i, 0)),          # cls
        pl.BlockSpec((tb, E), lambda i, s: (i, 0)),          # events1
        pl.BlockSpec((tb, E), lambda i, s: (i, 0)),          # mask_events1
        pl.BlockSpec((tb, E), lambda i, s: (i, 0)),          # events2
        pl.BlockSpec((tb, E), lambda i, s: (i, 0)),          # mask_events2
        pl.BlockSpec((3, H, H), lambda i, s: (0, 0, 0),
                     pipeline_mode=pl.Buffered(1)),          # w_fc (resident)
        pl.BlockSpec((1, H), lambda i, s: (0, 0),
                     pipeline_mode=pl.Buffered(1)),          # b_fc (resident)
    ]
    out_specs = pl.BlockSpec((tb, 3 * H), lambda i, s: (i, 0))
    out_shape = jax.ShapeDtypeStruct((B, 3 * H), jnp.float32)

    slab = pl.pallas_call(
        _text_encoder_head_kernel,
        grid=grid,
        in_specs=in_specs,
        out_specs=out_specs,
        out_shape=out_shape,
        scratch_shapes=[pltpu.VMEM((tb, 2, H), jnp.float32)],
        compiler_params=pltpu.CompilerParams(
            dimension_semantics=("parallel", "arbitrary"),
            vmem_limit_bytes=vmem_limit),
        cost_estimate=cost,
    )(seq_out.astype(jnp.bfloat16),
      cls_out.astype(jnp.float32),
      events1.astype(jnp.int32), mask_events1.astype(jnp.float32),
      events2.astype(jnp.int32), mask_events2.astype(jnp.float32),
      w_fc.reshape(3, H, H).astype(jnp.bfloat16),
      b_fc.reshape(1, H).astype(jnp.float32))

    rep = slab[:, 0:H]
    e1_rep = slab[:, H:2 * H]
    e2_rep = slab[:, 2 * H:3 * H]
    # forward returns (event_rep, cls_output, e1_rep, e2_rep)
    return rep, cls_out, e1_rep, e2_rep


def bert_stub(sentences, mask_sentences, emb_table, w_pool, b_pool):
    """Deterministic stand-in for BertModel: embedding lookup + tanh pooler."""
    del mask_sentences  # attention mask unused by the stub
    sequence_output = emb_table[sentences]                        # (B, S, H)
    cls_output = jnp.tanh(sequence_output[:, 0, :] @ w_pool + b_pool)
    return sequence_output, cls_output


def text_encoder_forward(batched_text_data, params):
    sentences, mask_s, events1, mask_e1, events2, mask_e2 = batched_text_data
    seq_out, cls_out = bert_stub(sentences, mask_s, params["emb"],
                                 params["w_pool"], params["b_pool"])
    return text_encoder_head(seq_out, cls_out, events1, mask_e1,
                             events2, mask_e2, params["w_fc"], params["b_fc"])


def _reference(batched_text_data, params):
    """Plain-JAX reference of the same forward for verification."""
    sentences, mask_s, events1, mask_e1, events2, mask_e2 = batched_text_data
    seq_out, cls_out = bert_stub(sentences, mask_s, params["emb"],
                                 params["w_pool"], params["b_pool"])
    gather = jax.vmap(lambda a, i: a[i])
    ev1 = gather(seq_out, events1) * mask_e1[:, :, None].astype(jnp.float32)
    ev2 = gather(seq_out, events2) * mask_e2[:, :, None].astype(jnp.float32)
    e1 = jnp.sum(ev1, axis=1)
    e2 = jnp.sum(ev2, axis=1)
    rep = jnp.concatenate([cls_out, e1, e2], axis=-1)
    z = rep @ params["w_fc"] + params["b_fc"]
    rep = jnp.where(z >= 0, z, 0.01 * z)
    return rep, cls_out, e1, e2


if __name__ == "__main__":
    # batch, seq len, text_hidden_dim, #event toks, vocab
    B, S, H, E, V = 16, 8, 32, 4, 50
    key = jax.random.PRNGKey(0)
    ks = jax.random.split(key, 10)

    # batched_text_data
    sentences = jax.random.randint(ks[0], (B, S), 0, V, dtype=jnp.int32)
    mask_sentences = jnp.ones((B, S), jnp.float32)
    events1 = jax.random.randint(ks[1], (B, E), 0, S, dtype=jnp.int32)
    mask_events1 = (jax.random.uniform(ks[2], (B, E)) > 0.3).astype(jnp.float32)
    events2 = jax.random.randint(ks[3], (B, E), 0, S, dtype=jnp.int32)
    mask_events2 = (jax.random.uniform(ks[4], (B, E)) > 0.3).astype(jnp.float32)
    batched_text_data = (sentences, mask_sentences, events1, mask_events1,
                         events2, mask_events2)

    # deterministic parameters (synthetic, no checkpoint)
    params = {
        "emb": jax.random.normal(ks[5], (V, H), jnp.float32) * 0.02,
        "w_pool": jax.random.normal(ks[6], (H, H), jnp.float32) / math.sqrt(H),
        "b_pool": jnp.zeros((H,), jnp.float32),
        "w_fc": jax.random.normal(ks[7], (3 * H, H), jnp.float32) / math.sqrt(3 * H),
        "b_fc": jax.random.normal(ks[8], (H,), jnp.float32) * 0.01,
    }

    out = jax.block_until_ready(text_encoder_forward(batched_text_data, params))
    ref = jax.block_until_ready(_reference(batched_text_data, params))

    # MXU contractions run in bf16 with f32 accumulation, so allow a modest
    # tolerance vs the f32 VPU/gather reference.
    for o, r in zip(out, ref):
        assert o.shape == r.shape and o.dtype == r.dtype
        assert jnp.allclose(o, r, atol=2e-2, rtol=2e-2), "mismatch vs reference"

    print("KERNEL_OK")
</pallas_src>

<mosaic_0001>
module attributes {stable_mosaic.version = 11 : i64} {
  func.func @_text_encoder_head_kernel(%arg0: i32, %arg1: i32, %arg2: memref<16x8x32xbf16, #tpu.memory_space<vmem>>, %arg3: memref<16x32xf32, #tpu.memory_space<vmem>>, %arg4: memref<16x4xi32, #tpu.memory_space<vmem>>, %arg5: memref<16x4xf32, #tpu.memory_space<vmem>>, %arg6: memref<16x4xi32, #tpu.memory_space<vmem>>, %arg7: memref<16x4xf32, #tpu.memory_space<vmem>>, %arg8: memref<3x32x32xbf16, #tpu.memory_space<vmem>>, %arg9: memref<1x32xf32, #tpu.memory_space<vmem>>, %arg10: memref<16x96xf32, #tpu.memory_space<vmem>>, %arg11: memref<16x2x32xf32, #tpu.memory_space<vmem>>) attributes {dimension_semantics = [#tpu.dimension_semantics<parallel>, #tpu.dimension_semantics<arbitrary>], iteration_bounds = array<i64: 1, 1>, scalar_prefetch = 0 : i64, scratch_operands = 1 : i64, tpu.core_type = #tpu.core_type<tc>, window_params = [{transform_indices = @transform_0, window_bounds = array<i64: 16, 8, 32>}, {transform_indices = @transform_1, window_bounds = array<i64: 16, 32>}, {transform_indices = @transform_2, window_bounds = array<i64: 16, 4>}, {transform_indices = @transform_3, window_bounds = array<i64: 16, 4>}, {transform_indices = @transform_4, window_bounds = array<i64: 16, 4>}, {transform_indices = @transform_5, window_bounds = array<i64: 16, 4>}, {pipeline_mode = #tpu.pipeline_mode<synchronous>, transform_indices = @transform_6, window_bounds = array<i64: 3, 32, 32>}, {pipeline_mode = #tpu.pipeline_mode<synchronous>, transform_indices = @transform_7, window_bounds = array<i64: 1, 32>}, {transform_indices = @transform_8, window_bounds = array<i64: 16, 96>}]} {
    %c0_i32 = arith.constant 0 : i32
    %0 = arith.cmpi eq, %arg1, %c0_i32 : i32
    %1 = arith.extui %0 : i1 to i32
    %c0_i32_0 = arith.constant 0 : i32
    %2 = arith.cmpi ne, %1, %c0_i32_0 : i32
    scf.if %2 {
      %cst_21 = arith.constant 0.000000e+00 : f32
      %41 = vector.broadcast %cst_21 : f32 to vector<16x2x32xf32>
      %c0_22 = arith.constant 0 : index
      %c0_23 = arith.constant 0 : index
      %c0_24 = arith.constant 0 : index
      %42 = vector.load %arg11[%c0_22, %c0_23, %c0_24] : memref<16x2x32xf32, #tpu.memory_space<vmem>>, vector<16x2x32xf32>
      tpu.vector_store %arg11[%c0_22, %c0_23, %c0_24], %41 {strides = array<i32>} : memref<16x2x32xf32, #tpu.memory_space<vmem>>, vector<16x2x32xf32>,
    } else {
    }
    %c8_i32 = arith.constant 8 : i32
    %3 = arith.muli %arg1, %c8_i32 : i32
    %4 = tpu.iota {dimensions = array<i32: 2>} : vector<16x4x8xi32>
    %5 = vector.broadcast %3 : i32 to vector<16x4x8xi32>
    %6 = arith.addi %4, %5 : vector<16x4x8xi32>
    %c0 = arith.constant 0 : index
    %c0_1 = arith.constant 0 : index
    %7 = vector.load %arg4[%c0, %c0_1] : memref<16x4xi32, #tpu.memory_space<vmem>>, vector<16x4xi32>
    %8 = vector.shape_cast %7 : vector<16x4xi32> to vector<16x4x1xi32>
    %9 = vector.broadcast %8 : vector<16x4x1xi32> to vector<16x4x8xi32>
    %10 = arith.cmpi eq, %6, %9 : vector<16x4x8xi32>
    %11 = arith.extui %10 : vector<16x4x8xi1> to vector<16x4x8xi32>
    %12 = arith.sitofp %11 : vector<16x4x8xi32> to vector<16x4x8xf32>
    %c0_2 = arith.constant 0 : index
    %c0_3 = arith.constant 0 : index
    %13 = vector.load %arg5[%c0_2, %c0_3] : memref<16x4xf32, #tpu.memory_space<vmem>>, vector<16x4xf32>
    %14 = vector.shape_cast %13 : vector<16x4xf32> to vector<16x4x1xf32>
    %15 = vector.broadcast %14 : vector<16x4x1xf32> to vector<16x4x8xf32>
    %16 = arith.mulf %12, %15 : vector<16x4x8xf32>
    %c0_4 = arith.constant 0 : index
    %c0_5 = arith.constant 0 : index
    %17 = vector.load %arg6[%c0_4, %c0_5] : memref<16x4xi32, #tpu.memory_space<vmem>>, vector<16x4xi32>
    %18 = vector.shape_cast %17 : vector<16x4xi32> to vector<16x4x1xi32>
    %19 = vector.broadcast %18 : vector<16x4x1xi32> to vector<16x4x8xi32>
    %20 = arith.cmpi eq, %6, %19 : vector<16x4x8xi32>
    %21 = arith.extui %20 : vector<16x4x8xi1> to vector<16x4x8xi32>
    %22 = arith.sitofp %21 : vector<16x4x8xi32> to vector<16x4x8xf32>
    %c0_6 = arith.constant 0 : index
    %c0_7 = arith.constant 0 : index
    %23 = vector.load %arg7[%c0_6, %c0_7] : memref<16x4xf32, #tpu.memory_space<vmem>>, vector<16x4xf32>
    %24 = vector.shape_cast %23 : vector<16x4xf32> to vector<16x4x1xf32>
    %25 = vector.broadcast %24 : vector<16x4x1xf32> to vector<16x4x8xf32>
    %26 = arith.mulf %22, %25 : vector<16x4x8xf32>
    %cst = arith.constant dense<0.000000e+00> : vector<16x8xf32>
    %27 = vector.multi_reduction <add>, %16, %cst [1] : vector<16x4x8xf32> to vector<16x8xf32>
    %cst_8 = arith.constant dense<0.000000e+00> : vector<16x8xf32>
    %28 = vector.multi_reduction <add>, %26, %cst_8 [1] : vector<16x4x8xf32> to vector<16x8xf32>
    %29 = vector.shape_cast %27 : vector<16x8xf32> to vector<16x1x8xf32>
    %30 = vector.shape_cast %28 : vector<16x8xf32> to vector<16x1x8xf32>
    %31 = tpu.concatenate %29, %30 in 1 : vector<16x1x8xf32>, vector<16x1x8xf32> -> vector<16x2x8xf32>
    %32 = arith.truncf %31 : vector<16x2x8xf32> to vector<16x2x8xbf16>
    %c0_9 = arith.constant 0 : index
    %c0_10 = arith.constant 0 : index
    %c0_11 = arith.constant 0 : index
    %33 = vector.load %arg11[%c0_9, %c0_10, %c0_11] : memref<16x2x32xf32, #tpu.memory_space<vmem>>, vector<16x2x32xf32>
    %c0_12 = arith.constant 0 : index
    %c0_13 = arith.constant 0 : index
    %c0_14 = arith.constant 0 : index
    %34 = vector.load %arg2[%c0_12, %c0_13, %c0_14] : memref<16x8x32xbf16, #tpu.memory_space<vmem>>, vector<16x8x32xbf16>
    "tpu.trace_start"() <{level = 10 : i32, message = "bks,bsh->bkh"}> : () -> ()
    %cst_15 = arith.constant dense<0.000000e+00> : vector<16x2x32xf32>
    %35 = tpu.matmul %32, %34, %cst_15 {dimension_numbers = #tpu.dot_dimension_numbers<[2], [1], [1], [2], [0, 0, 0, 1, 1, 2], [0], [0]>} : vector<16x2x8xbf16>, vector<16x8x32xbf16>, vector<16x2x32xf32> -> vector<16x2x32xf32>
    "tpu.trace_stop"() : () -> ()
    %36 = arith.addf %33, %35 : vector<16x2x32xf32>
    %c0_16 = arith.constant 0 : index
    %c0_17 = arith.constant 0 : index
    %c0_18 = arith.constant 0 : index
    %37 = vector.load %arg11[%c0_16, %c0_17, %c0_18] : memref<16x2x32xf32, #tpu.memory_space<vmem>>, vector<16x2x32xf32>
    tpu.vector_store %arg11[%c0_16, %c0_17, %c0_18], %36 {strides = array<i32>} : memref<16x2x32xf32, #tpu.memory_space<vmem>>, vector<16x2x32xf32>,
    %c0_i32_19 = arith.constant 0 : i32
    %38 = arith.cmpi eq, %arg1, %c0_i32_19 : i32
    %39 = arith.extui %38 : i1 to i32
    %c0_i32_20 = arith.constant 0 : i32
    %40 = arith.cmpi ne, %39, %c0_i32_20 : i32
    scf.if %40 {
      %c0_21 = arith.constant 0 : index
      %c0_22 = arith.constant 0 : index
      %c0_23 = arith.constant 0 : index
      %41 = vector.load %arg11[%c0_21, %c0_22, %c0_23] : memref<16x2x32xf32, #tpu.memory_space<vmem>>, vector<16x1x32xf32>
      %42 = vector.shape_cast %41 : vector<16x1x32xf32> to vector<16x32xf32>
      %c0_24 = arith.constant 0 : index
      %c1 = arith.constant 1 : index
      %c0_25 = arith.constant 0 : index
      %43 = vector.load %arg11[%c0_24, %c1, %c0_25] : memref<16x2x32xf32, #tpu.memory_space<vmem>>, vector<16x1x32xf32>
      %44 = vector.shape_cast %43 : vector<16x1x32xf32> to vector<16x32xf32>
      %c0_26 = arith.constant 0 : index
      %c0_27 = arith.constant 0 : index
      %45 = vector.load %arg3[%c0_26, %c0_27] : memref<16x32xf32, #tpu.memory_space<vmem>>, vector<16x32xf32>
      %46 = arith.truncf %45 : vector<16x32xf32> to vector<16x32xbf16>
      %c0_28 = arith.constant 0 : index
      %c0_29 = arith.constant 0 : index
      %c0_30 = arith.constant 0 : index
      %47 = vector.load %arg8[%c0_28, %c0_29, %c0_30] : memref<3x32x32xbf16, #tpu.memory_space<vmem>>, vector<1x32x32xbf16>
      %48 = vector.shape_cast %47 : vector<1x32x32xbf16> to vector<32x32xbf16>
      %cst_31 = arith.constant dense<0.000000e+00> : vector<16x32xf32>
      %49 = tpu.matmul %46, %48, %cst_31 {dimension_numbers = #tpu.dot_dimension_numbers<[1], [0], [0], [1], [0, 0, 1, 1], [], []>} : vector<16x32xbf16>, vector<32x32xbf16>, vector<16x32xf32> -> vector<16x32xf32>
      %50 = arith.truncf %42 : vector<16x32xf32> to vector<16x32xbf16>
      %c1_32 = arith.constant 1 : index
      %c0_33 = arith.constant 0 : index
      %c0_34 = arith.constant 0 : index
      %51 = vector.load %arg8[%c1_32, %c0_33, %c0_34] : memref<3x32x32xbf16, #tpu.memory_space<vmem>>, vector<1x32x32xbf16>
      %52 = vector.shape_cast %51 : vector<1x32x32xbf16> to vector<32x32xbf16>
      %cst_35 = arith.constant dense<0.000000e+00> : vector<16x32xf32>
      %53 = tpu.matmul %50, %52, %cst_35 {dimension_numbers = #tpu.dot_dimension_numbers<[1], [0], [0], [1], [0, 0, 1, 1], [], []>} : vector<16x32xbf16>, vector<32x32xbf16>, vector<16x32xf32> -> vector<16x32xf32>
      %54 = arith.addf %49, %53 : vector<16x32xf32>
      %55 = arith.truncf %44 : vector<16x32xf32> to vector<16x32xbf16>
      %c2 = arith.constant 2 : index
      %c0_36 = arith.constant 0 : index
      %c0_37 = arith.constant 0 : index
      %56 = vector.load %arg8[%c2, %c0_36, %c0_37] : memref<3x32x32xbf16, #tpu.memory_space<vmem>>, vector<1x32x32xbf16>
      %57 = vector.shape_cast %56 : vector<1x32x32xbf16> to vector<32x32xbf16>
      %cst_38 = arith.constant dense<0.000000e+00> : vector<16x32xf32>
      %58 = tpu.matmul %55, %57, %cst_38 {dimension_numbers = #tpu.dot_dimension_numbers<[1], [0], [0], [1], [0, 0, 1, 1], [], []>} : vector<16x32xbf16>, vector<32x32xbf16>, vector<16x32xf32> -> vector<16x32xf32>
      %59 = arith.addf %54, %58 : vector<16x32xf32>
      %c0_39 = arith.constant 0 : index
      %c0_40 = arith.constant 0 : index
      %60 = vector.load %arg9[%c0_39, %c0_40] : memref<1x32xf32, #tpu.memory_space<vmem>>, vector<1x32xf32>
      %61 = vector.broadcast %60 : vector<1x32xf32> to vector<16x32xf32>
      %62 = arith.addf %59, %61 : vector<16x32xf32>
      %cst_41 = arith.constant 0.000000e+00 : f32
      %63 = vector.broadcast %cst_41 : f32 to vector<16x32xf32>
      %64 = arith.cmpf oge, %62, %63 : vector<16x32xf32>
      %cst_42 = arith.constant 0.00999999977 : f32
      %65 = vector.broadcast %cst_42 : f32 to vector<16x32xf32>
      %66 = arith.mulf %65, %62 : vector<16x32xf32>
      %67 = arith.select %64, %62, %66 : vector<16x32xi1>, vector<16x32xf32>
      %68 = tpu.concatenate %67, %42, %44 in 1 : vector<16x32xf32>, vector<16x32xf32>, vector<16x32xf32> -> vector<16x96xf32>
      %c0_43 = arith.constant 0 : index
      %c0_44 = arith.constant 0 : index
      %69 = vector.load %arg10[%c0_43, %c0_44] : memref<16x96xf32, #tpu.memory_space<vmem>>, vector<16x96xf32>
      tpu.vector_store %arg10[%c0_43, %c0_44], %68 {strides = array<i32>} : memref<16x96xf32, #tpu.memory_space<vmem>>, vector<16x96xf32>,
    } else {
    }
    return
  }
  func.func @transform_0(%arg0: i32, %arg1: i32) -> (i32, i32, i32) {
    %c0_i32 = arith.constant 0 : i32
    %c0_i32_0 = arith.constant 0 : i32
    return %arg0, %arg1, %c0_i32 : i32, i32, i32
  }
  func.func @transform_1(%arg0: i32, %arg1: i32) -> (i32, i32) {
    %c0_i32 = arith.constant 0 : i32
    %c0_i32_0 = arith.constant 0 : i32
    return %arg0, %c0_i32 : i32, i32
  }
  func.func @transform_2(%arg0: i32, %arg1: i32) -> (i32, i32) {
    %c0_i32 = arith.constant 0 : i32
    %c0_i32_0 = arith.constant 0 : i32
    return %arg0, %c0_i32 : i32, i32
  }
  func.func @transform_3(%arg0: i32, %arg1: i32) -> (i32, i32) {
    %c0_i32 = arith.constant 0 : i32
    %c0_i32_0 = arith.constant 0 : i32
    return %arg0, %c0_i32 : i32, i32
  }
  func.func @transform_4(%arg0: i32, %arg1: i32) -> (i32, i32) {
    %c0_i32 = arith.constant 0 : i32
    %c0_i32_0 = arith.constant 0 : i32
    return %arg0, %c0_i32 : i32, i32
  }
  func.func @transform_5(%arg0: i32, %arg1: i32) -> (i32, i32) {
    %c0_i32 = arith.constant 0 : i32
    %c0_i32_0 = arith.constant 0 : i32
    return %arg0, %c0_i32 : i32, i32
  }
  func.func @transform_6(%arg0: i32, %arg1: i32) -> (i32, i32, i32) {
    %c0_i32 = arith.constant 0 : i32
    %c0_i32_0 = arith.constant 0 : i32
    %c0_i32_1 = arith.constant 0 : i32
    %c0_i32_2 = arith.constant 0 : i32
    return %c0_i32, %c0_i32_0, %c0_i32_1 : i32, i32, i32
  }
  func.func @transform_7(%arg0: i32, %arg1: i32) -> (i32, i32) {
    %c0_i32 = arith.constant 0 : i32
    %c0_i32_0 = arith.constant 0 : i32
    %c0_i32_1 = arith.constant 0 : i32
    return %c0_i32, %c0_i32_0 : i32, i32
  }
  func.func @transform_8(%arg0: i32, %arg1: i32) -> (i32, i32) {
    %c0_i32 = arith.constant 0 : i32
    %c0_i32_0 = arith.constant 0 : i32
    return %arg0, %c0_i32 : i32, i32
  }
}

</mosaic_0001>

<llo_original>
// kernel: tpu_custom_call.1
$region0: #{tpu_custom_call.1}
  #allocation0 [shape = 'u32[]', space=smem, size = 0x4, offset = 0x4, fixed_abs, tag = 'smem constant byte address 0x4 - core index']
  #allocation1 [shape = 'u32[144,128]{1,0:T(1,128)}', space=vmem, size = 0x12000, scoped, tag = 'internal scratch']
  #allocation2 [shape = 'f32[16,2,32]{2,1,0:T(2,128)}', space=vmem, size = 0x4000, scoped, tag = 'scratch operand']
  %s0 = inlined_call_operand.vmem [shape: bf16[16,8,32], index: 0, kind: input, shape index: {}]
  %s1 = inlined_call_operand.vmem [shape: f32[16,32], index: 1, kind: input, shape index: {}]
  %s2 = inlined_call_operand.vmem [shape: s32[16,4], index: 2, kind: input, shape index: {}]
  %s3 = inlined_call_operand.vmem [shape: f32[16,4], index: 3, kind: input, shape index: {}]
  %s4 = inlined_call_operand.vmem [shape: s32[16,4], index: 4, kind: input, shape index: {}]
  %s5 = inlined_call_operand.vmem [shape: f32[16,4], index: 5, kind: input, shape index: {}]
  %s6 = inlined_call_operand.hbm [shape: bf16[3,32,32], index: 6, kind: input, shape index: {}]
  %s7 = inlined_call_operand.vmem [shape: f32[1,32], index: 7, kind: input, shape index: {}]
  %s8 = inlined_call_operand.hbm [shape: f32[16,96], index: 8, kind: output, shape index: {}]
  %s9 = sld [smem:[#allocation0]]
  $region54: #{tpu_custom_call.1} parent=0
    _
  %s11 = ssub.s32 1, %s9
  %s12 = scalar_select 0, %s11, %s9
  $region1: #{tpu_custom_call.1} parent=0
    #allocation3 [shape = 'u8[24576]{0}', space=vmem, size = 0x6000, scoped, tag = 'input window, operand 6, single buffered']
    #allocation4 [shape = 's32[1]{0}', space=sflag, size = 0x4, scoped, tag = 'scoped memory for tpu_custom_call.1']
    #allocation5 [shape = 's32[1]{0}', space=sflag, size = 0x4, scoped, tag = 'scoped memory for tpu_custom_call.1']
    #allocation6 [shape = 'u8[8192]{0}', space=vmem, size = 0x2000, scoped, tag = 'output window, operand 0, single buffered']
    %13 = vsyncpa [#allocation4], 0
    %14 = vsyncpa [#allocation5], 0
    // Predicated region
    $region2: #{tpu_custom_call.1} parent=1 // pred_check
      _
    $region3: #{tpu_custom_call.1} parent=1 // pred_check_branch
      %16 = sbr.rel (0) target = $region5
    $region4: #{tpu_custom_call.1} parent=1 // pred_region
      _
    $region5: #{tpu_custom_call.1} parent=1 // pred_fallthru
      _
    // Predicated region
    $region6: #{tpu_custom_call.1} parent=1 // pred_check
      _
    $region7: #{tpu_custom_call.1} parent=1 // pred_check_branch
      %18 = sbr.rel (0) target = $region9
    $region8: #{tpu_custom_call.1} parent=1 // pred_region
      _
    $region9: #{tpu_custom_call.1} parent=1 // pred_fallthru
      _
    // Predicated region
    $region10: #{tpu_custom_call.1} parent=1 // pred_check
      _
    $region11: #{tpu_custom_call.1} parent=1 // pred_check_branch
      %20 = sbr.rel (0) target = $region13
    $region12: #{tpu_custom_call.1} parent=1 // pred_region
      _
    $region13: #{tpu_custom_call.1} parent=1 // pred_fallthru
      _
    // Predicated region
    $region14: #{tpu_custom_call.1} parent=1 // pred_check
      _
    $region15: #{tpu_custom_call.1} parent=1 // pred_check_branch
      %22 = sbr.rel (0) target = $region17
    $region16: #{tpu_custom_call.1} parent=1 // pred_region
      _
    $region17: #{tpu_custom_call.1} parent=1 // pred_fallthru
      _
    // Predicated region
    $region18: #{tpu_custom_call.1} parent=1 // pred_check
      _
    $region19: #{tpu_custom_call.1} parent=1 // pred_check_branch
      %24 = sbr.rel (0) target = $region21
    $region20: #{tpu_custom_call.1} parent=1 // pred_region
      _
    $region21: #{tpu_custom_call.1} parent=1 // pred_fallthru
      _
    // Predicated region
    $region22: #{tpu_custom_call.1} parent=1 // pred_check
      _
    $region23: #{tpu_custom_call.1} parent=1 // pred_check_branch
      %26 = sbr.rel (0) target = $region25
    $region24: #{tpu_custom_call.1} parent=1 // pred_region
      _
    $region25: #{tpu_custom_call.1} parent=1 // pred_fallthru
      _
    // Predicated region
    $region26: #{tpu_custom_call.1} parent=1 // pred_check
      _
    $region27: #{tpu_custom_call.1} parent=1 // pred_check_branch
      %28 = sbr.rel (0) target = $region29
    $region28: #{tpu_custom_call.1} parent=1 // pred_region
      %s30 = ssub.s32 768, 768
      %31 = vsyncadd [#allocation4], %s30
      %s32 = sshll.u32 [#allocation3], 4
      %s33 = int_to_ptr.vmem [resolvable:$true] %s32
      %38 = dma.hbm_to_vmem [thread:$0]  %s6, 768, %s33, [#allocation4], 64, 64, 4
    $region29: #{tpu_custom_call.1} parent=1 // pred_fallthru
      _
    // Predicated region
    $region30: #{tpu_custom_call.1} parent=1 // pred_check
      _
    $region31: #{tpu_custom_call.1} parent=1 // pred_check_branch
      %40 = sbr.rel (0) target = $region33
    $region32: #{tpu_custom_call.1} parent=1 // pred_region
      _
    $region33: #{tpu_custom_call.1} parent=1 // pred_fallthru
      _
    // Predicated region
    $region34: #{tpu_custom_call.1} parent=1 // pred_check
      _
    $region35: #{tpu_custom_call.1} parent=1 // pred_check_branch
      %42 = sbr.rel (0) target = $region37
    $region36: #{tpu_custom_call.1} parent=1 // pred_region
      %43 = dma.done [#allocation4], 768
    $region37: #{tpu_custom_call.1} parent=1 // pred_fallthru
      _
    %p45 = scmp.eq.s32.totalorder 0, 0
    // Predicated region
    $region38: #{tpu_custom_call.1} parent=1 // pred_check
      %p46 = pneg %p45
    $region39: #{tpu_custom_call.1} parent=1 // pred_check_branch
      %48 = sbr.rel (%p46) target = $region41
    $region40: #{tpu_custom_call.1} parent=1 // pred_region
      %vm49 = vcmask 254976
      %50 = vst.msk [vmem:[#allocation2] sm:$0x3] %vm49, 0.0
      %51 = vst.msk [vmem:[#allocation2 + $0x2] sm:$0x3] %vm49, 0.0
      %52 = vst.msk [vmem:[#allocation2 + $0x4] sm:$0x3] %vm49, 0.0
      %53 = vst.msk [vmem:[#allocation2 + $0x6] sm:$0x3] %vm49, 0.0
      %54 = vst.msk [vmem:[#allocation2 + $0x8] sm:$0x3] %vm49, 0.0
      %55 = vst.msk [vmem:[#allocation2 + $0xa] sm:$0x3] %vm49, 0.0
      %56 = vst.msk [vmem:[#allocation2 + $0xc] sm:$0x3] %vm49, 0.0
      %57 = vst.msk [vmem:[#allocation2 + $0xe] sm:$0x3] %vm49, 0.0
      %58 = vst.msk [vmem:[#allocation2 + $0x10] sm:$0x3] %vm49, 0.0
      %59 = vst.msk [vmem:[#allocation2 + $0x12] sm:$0x3] %vm49, 0.0
      %60 = vst.msk [vmem:[#allocation2 + $0x14] sm:$0x3] %vm49, 0.0
      %61 = vst.msk [vmem:[#allocation2 + $0x16] sm:$0x3] %vm49, 0.0
      %62 = vst.msk [vmem:[#allocation2 + $0x18] sm:$0x3] %vm49, 0.0
      %63 = vst.msk [vmem:[#allocation2 + $0x1a] sm:$0x3] %vm49, 0.0
      %64 = vst.msk [vmem:[#allocation2 + $0x1c] sm:$0x3] %vm49, 0.0
      %65 = vst.msk [vmem:[#allocation2 + $0x1e] sm:$0x3] %vm49, 0.0
    $region41: #{tpu_custom_call.1} parent=1 // pred_fallthru
      _
    %s66 = smul.u32 0, 8
    %v67 = vlaneseq
    %v68 = vand.u32 %v67, 127
    %v69 = vstv %s66
    %v70 = vadd.s32 %v68, %v69
    %v71 = vld [vmem:[%s2] sm:$0xff]
    %v72 = vld [vmem:[%s2 + $0x8] sm:$0xff]
    %v73 = vlaneseq
    %v74 = vshrl.u32 %v73, 7
    %v75 = vsub.s32 0, %v74
    %v76 = vrot.slane %v71, %v75
    %78 = vbcast.lane.b32.xlu0 %v76, 256
    %v79 = vpop.permute.xlu0 %78
    %v80 = vlaneseq
    %v81 = vshrl.u32 %v80, 7
    %v82 = vsub.s32 1, %v81
    %v83 = vrot.slane %v71, %v82
    %85 = vbcast.lane.b32.xlu0 %v83, 256
    %v86 = vpop.permute.xlu0 %85
    %v87 = vlaneseq
    %v88 = vshrl.u32 %v87, 7
    %v89 = vsub.s32 2, %v88
    %v90 = vrot.slane %v71, %v89
    %92 = vbcast.lane.b32.xlu0 %v90, 256
    %v93 = vpop.permute.xlu0 %92
    %v94 = vlaneseq
    %v95 = vshrl.u32 %v94, 7
    %v96 = vsub.s32 3, %v95
    %v97 = vrot.slane %v71, %v96
    %99 = vbcast.lane.b32.xlu0 %v97, 256
    %v100 = vpop.permute.xlu0 %99
    %v101 = vlaneseq
    %v102 = vshrl.u32 %v101, 7
    %v103 = vsub.s32 4, %v102
    %v104 = vrot.slane %v71, %v103
    %106 = vbcast.lane.b32.xlu0 %v104, 256
    %v107 = vpop.permute.xlu0 %106
    %v108 = vlaneseq
    %v109 = vshrl.u32 %v108, 7
    %v110 = vsub.s32 5, %v109
    %v111 = vrot.slane %v71, %v110
    %113 = vbcast.lane.b32.xlu0 %v111, 256
    %v114 = vpop.permute.xlu0 %113
    %v115 = vlaneseq
    %v116 = vshrl.u32 %v115, 7
    %v117 = vsub.s32 6, %v116
    %v118 = vrot.slane %v71, %v117
    %120 = vbcast.lane.b32.xlu0 %v118, 256
    %v121 = vpop.permute.xlu0 %120
    %v122 = vlaneseq
    %v123 = vshrl.u32 %v122, 7
    %v124 = vsub.s32 7, %v123
    %v125 = vrot.slane %v71, %v124
    %127 = vbcast.lane.b32.xlu0 %v125, 256
    %v128 = vpop.permute.xlu0 %127
    %v129 = vlaneseq
    %v130 = vshrl.u32 %v129, 7
    %v131 = vsub.s32 0, %v130
    %v132 = vrot.slane %v72, %v131
    %134 = vbcast.lane.b32.xlu0 %v132, 256
    %v135 = vpop.permute.xlu0 %134
    %v136 = vlaneseq
    %v137 = vshrl.u32 %v136, 7
    %v138 = vsub.s32 1, %v137
    %v139 = vrot.slane %v72, %v138
    %141 = vbcast.lane.b32.xlu0 %v139, 256
    %v142 = vpop.permute.xlu0 %141
    %v143 = vlaneseq
    %v144 = vshrl.u32 %v143, 7
    %v145 = vsub.s32 2, %v144
    %v146 = vrot.slane %v72, %v145
    %148 = vbcast.lane.b32.xlu0 %v146, 256
    %v149 = vpop.permute.xlu0 %148
    %v150 = vlaneseq
    %v151 = vshrl.u32 %v150, 7
    %v152 = vsub.s32 3, %v151
    %v153 = vrot.slane %v72, %v152
    %155 = vbcast.lane.b32.xlu0 %v153, 256
    %v156 = vpop.permute.xlu0 %155
    %v157 = vlaneseq
    %v158 = vshrl.u32 %v157, 7
    %v159 = vsub.s32 4, %v158
    %v160 = vrot.slane %v72, %v159
    %162 = vbcast.lane.b32.xlu0 %v160, 256
    %v163 = vpop.permute.xlu0 %162
    %v164 = vlaneseq
    %v165 = vshrl.u32 %v164, 7
    %v166 = vsub.s32 5, %v165
    %v167 = vrot.slane %v72, %v166
    %169 = vbcast.lane.b32.xlu0 %v167, 256
    %v170 = vpop.permute.xlu0 %169
    %v171 = vlaneseq
    %v172 = vshrl.u32 %v171, 7
    %v173 = vsub.s32 6, %v172
    %v174 = vrot.slane %v72, %v173
    %176 = vbcast.lane.b32.xlu0 %v174, 256
    %v177 = vpop.permute.xlu0 %176
    %v178 = vlaneseq
    %v179 = vshrl.u32 %v178, 7
    %v180 = vsub.s32 7, %v179
    %v181 = vrot.slane %v72, %v180
    %183 = vbcast.lane.b32.xlu0 %v181, 256
    %v184 = vpop.permute.xlu0 %183
    %vm185 = vcmp.eq.s32.totalorder %v70, %v79
    %vm186 = vcmp.eq.s32.totalorder %v70, %v86
    %vm187 = vcmp.eq.s32.totalorder %v70, %v93
    %vm188 = vcmp.eq.s32.totalorder %v70, %v100
    %vm189 = vcmp.eq.s32.totalorder %v70, %v107
    %vm190 = vcmp.eq.s32.totalorder %v70, %v114
    %vm191 = vcmp.eq.s32.totalorder %v70, %v121
    %vm192 = vcmp.eq.s32.totalorder %v70, %v128
    %vm193 = vcmp.eq.s32.totalorder %v70, %v135
    %vm194 = vcmp.eq.s32.totalorder %v70, %v142
    %vm195 = vcmp.eq.s32.totalorder %v70, %v149
    %vm196 = vcmp.eq.s32.totalorder %v70, %v156
    %vm197 = vcmp.eq.s32.totalorder %v70, %v163
    %vm198 = vcmp.eq.s32.totalorder %v70, %v170
    %vm199 = vcmp.eq.s32.totalorder %v70, %v177
    %vm200 = vcmp.eq.s32.totalorder %v70, %v184
    %v201 = vsel %vm185, 1, 0
    %v202 = vsel %vm186, 1, 0
    %v203 = vsel %vm187, 1, 0
    %v204 = vsel %vm188, 1, 0
    %v205 = vsel %vm189, 1, 0
    %v206 = vsel %vm190, 1, 0
    %v207 = vsel %vm191, 1, 0
    %v208 = vsel %vm192, 1, 0
    %v209 = vsel %vm193, 1, 0
    %v210 = vsel %vm194, 1, 0
    %v211 = vsel %vm195, 1, 0
    %v212 = vsel %vm196, 1, 0
    %v213 = vsel %vm197, 1, 0
    %v214 = vsel %vm198, 1, 0
    %v215 = vsel %vm199, 1, 0
    %v216 = vsel %vm200, 1, 0
    %v217 = vcvt.s32.f32 %v201
    %v218 = vcvt.s32.f32 %v202
    %v219 = vcvt.s32.f32 %v203
    %v220 = vcvt.s32.f32 %v204
    %v221 = vcvt.s32.f32 %v205
    %v222 = vcvt.s32.f32 %v206
    %v223 = vcvt.s32.f32 %v207
    %v224 = vcvt.s32.f32 %v208
    %v225 = vcvt.s32.f32 %v209
    %v226 = vcvt.s32.f32 %v210
    %v227 = vcvt.s32.f32 %v211
    %v228 = vcvt.s32.f32 %v212
    %v229 = vcvt.s32.f32 %v213
    %v230 = vcvt.s32.f32 %v214
    %v231 = vcvt.s32.f32 %v215
    %v232 = vcvt.s32.f32 %v216
    %v233 = vld [vmem:[%s3] sm:$0xff]
    %v234 = vld [vmem:[%s3 + $0x8] sm:$0xff]
    %v235 = vlaneseq
    %v236 = vshrl.u32 %v235, 7
    %v237 = vsub.s32 0, %v236
    %v238 = vrot.slane %v233, %v237
    %240 = vbcast.lane.b32.xlu0 %v238, 256
    %v241 = vpop.permute.xlu0 %240
    %v242 = vlaneseq
    %v243 = vshrl.u32 %v242, 7
    %v244 = vsub.s32 1, %v243
    %v245 = vrot.slane %v233, %v244
    %247 = vbcast.lane.b32.xlu0 %v245, 256
    %v248 = vpop.permute.xlu0 %247
    %v249 = vlaneseq
    %v250 = vshrl.u32 %v249, 7
    %v251 = vsub.s32 2, %v250
    %v252 = vrot.slane %v233, %v251
    %254 = vbcast.lane.b32.xlu0 %v252, 256
    %v255 = vpop.permute.xlu0 %254
    %v256 = vlaneseq
    %v257 = vshrl.u32 %v256, 7
    %v258 = vsub.s32 3, %v257
    %v259 = vrot.slane %v233, %v258
    %261 = vbcast.lane.b32.xlu0 %v259, 256
    %v262 = vpop.permute.xlu0 %261
    %v263 = vlaneseq
    %v264 = vshrl.u32 %v263, 7
    %v265 = vsub.s32 4, %v264
    %v266 = vrot.slane %v233, %v265
    %268 = vbcast.lane.b32.xlu0 %v266, 256
    %v269 = vpop.permute.xlu0 %268
    %v270 = vlaneseq
    %v271 = vshrl.u32 %v270, 7
    %v272 = vsub.s32 5, %v271
    %v273 = vrot.slane %v233, %v272
    %275 = vbcast.lane.b32.xlu0 %v273, 256
    %v276 = vpop.permute.xlu0 %275
    %v277 = vlaneseq
    %v278 = vshrl.u32 %v277, 7
    %v279 = vsub.s32 6, %v278
    %v280 = vrot.slane %v233, %v279
    %282 = vbcast.lane.b32.xlu0 %v280, 256
    %v283 = vpop.permute.xlu0 %282
    %v284 = vlaneseq
    %v285 = vshrl.u32 %v284, 7
    %v286 = vsub.s32 7, %v285
    %v287 = vrot.slane %v233, %v286
    %289 = vbcast.lane.b32.xlu0 %v287, 256
    %v290 = vpop.permute.xlu0 %289
    %v291 = vlaneseq
    %v292 = vshrl.u32 %v291, 7
    %v293 = vsub.s32 0, %v292
    %v294 = vrot.slane %v234, %v293
    %296 = vbcast.lane.b32.xlu0 %v294, 256
    %v297 = vpop.permute.xlu0 %296
    %v298 = vlaneseq
    %v299 = vshrl.u32 %v298, 7
    %v300 = vsub.s32 1, %v299
    %v301 = vrot.slane %v234, %v300
    %303 = vbcast.lane.b32.xlu0 %v301, 256
    %v304 = vpop.permute.xlu0 %303
    %v305 = vlaneseq
    %v306 = vshrl.u32 %v305, 7
    %v307 = vsub.s32 2, %v306
    %v308 = vrot.slane %v234, %v307
    %310 = vbcast.lane.b32.xlu0 %v308, 256
    %v311 = vpop.permute.xlu0 %310
    %v312 = vlaneseq
    %v313 = vshrl.u32 %v312, 7
    %v314 = vsub.s32 3, %v313
    %v315 = vrot.slane %v234, %v314
    %317 = vbcast.lane.b32.xlu0 %v315, 256
    %v318 = vpop.permute.xlu0 %317
    %v319 = vlaneseq
    %v320 = vshrl.u32 %v319, 7
    %v321 = vsub.s32 4, %v320
    %v322 = vrot.slane %v234, %v321
    %324 = vbcast.lane.b32.xlu0 %v322, 256
    %v325 = vpop.permute.xlu0 %324
    %v326 = vlaneseq
    %v327 = vshrl.u32 %v326, 7
    %v328 = vsub.s32 5, %v327
    %v329 = vrot.slane %v234, %v328
    %331 = vbcast.lane.b32.xlu0 %v329, 256
    %v332 = vpop.permute.xlu0 %331
    %v333 = vlaneseq
    %v334 = vshrl.u32 %v333, 7
    %v335 = vsub.s32 6, %v334
    %v336 = vrot.slane %v234, %v335
    %338 = vbcast.lane.b32.xlu0 %v336, 256
    %v339 = vpop.permute.xlu0 %338
    %v340 = vlaneseq
    %v341 = vshrl.u32 %v340, 7
    %v342 = vsub.s32 7, %v341
    %v343 = vrot.slane %v234, %v342
    %345 = vbcast.lane.b32.xlu0 %v343, 256
    %v346 = vpop.permute.xlu0 %345
    %v347 = vmul.f32 %v217, %v241
    %v348 = vmul.f32 %v218, %v248
    %v349 = vmul.f32 %v219, %v255
    %v350 = vmul.f32 %v220, %v262
    %v351 = vmul.f32 %v221, %v269
    %v352 = vmul.f32 %v222, %v276
    %v353 = vmul.f32 %v223, %v283
    %v354 = vmul.f32 %v224, %v290
    %v355 = vmul.f32 %v225, %v297
    %v356 = vmul.f32 %v226, %v304
    %v357 = vmul.f32 %v227, %v311
    %v358 = vmul.f32 %v228, %v318
    %v359 = vmul.f32 %v229, %v325
    %v360 = vmul.f32 %v230, %v332
    %v361 = vmul.f32 %v231, %v339
    %v362 = vmul.f32 %v232, %v346
    %v363 = vld [vmem:[%s4] sm:$0xff]
    %v364 = vld [vmem:[%s4 + $0x8] sm:$0xff]
    %v365 = vlaneseq
    %v366 = vshrl.u32 %v365, 7
    %v367 = vsub.s32 0, %v366
    %v368 = vrot.slane %v363, %v367
    %370 = vbcast.lane.b32.xlu0 %v368, 256
    %v371 = vpop.permute.xlu0 %370
    %v372 = vlaneseq
    %v373 = vshrl.u32 %v372, 7
    %v374 = vsub.s32 1, %v373
    %v375 = vrot.slane %v363, %v374
    %377 = vbcast.lane.b32.xlu0 %v375, 256
    %v378 = vpop.permute.xlu0 %377
    %v379 = vlaneseq
    %v380 = vshrl.u32 %v379, 7
    %v381 = vsub.s32 2, %v380
    %v382 = vrot.slane %v363, %v381
    %384 = vbcast.lane.b32.xlu0 %v382, 256
    %v385 = vpop.permute.xlu0 %384
    %v386 = vlaneseq
    %v387 = vshrl.u32 %v386, 7
    %v388 = vsub.s32 3, %v387
    %v389 = vrot.slane %v363, %v388
    %391 = vbcast.lane.b32.xlu0 %v389, 256
    %v392 = vpop.permute.xlu0 %391
    %v393 = vlaneseq
    %v394 = vshrl.u32 %v393, 7
    %v395 = vsub.s32 4, %v394
    %v396 = vrot.slane %v363, %v395
    %398 = vbcast.lane.b32.xlu0 %v396, 256
    %v399 = vpop.permute.xlu0 %398
    %v400 = vlaneseq
    %v401 = vshrl.u32 %v400, 7
    %v402 = vsub.s32 5, %v401
    %v403 = vrot.slane %v363, %v402
    %405 = vbcast.lane.b32.xlu0 %v403, 256
    %v406 = vpop.permute.xlu0 %405
    %v407 = vlaneseq
    %v408 = vshrl.u32 %v407, 7
    %v409 = vsub.s32 6, %v408
    %v410 = vrot.slane %v363, %v409
    %412 = vbcast.lane.b32.xlu0 %v410, 256
    %v413 = vpop.permute.xlu0 %412
    %v414 = vlaneseq
    %v415 = vshrl.u32 %v414, 7
    %v416 = vsub.s32 7, %v415
    %v417 = vrot.slane %v363, %v416
    %419 = vbcast.lane.b32.xlu0 %v417, 256
    %v420 = vpop.permute.xlu0 %419
    %v421 = vlaneseq
    %v422 = vshrl.u32 %v421, 7
    %v423 = vsub.s32 0, %v422
    %v424 = vrot.slane %v364, %v423
    %426 = vbcast.lane.b32.xlu0 %v424, 256
    %v427 = vpop.permute.xlu0 %426
    %v428 = vlaneseq
    %v429 = vshrl.u32 %v428, 7
    %v430 = vsub.s32 1, %v429
    %v431 = vrot.slane %v364, %v430
    %433 = vbcast.lane.b32.xlu0 %v431, 256
    %v434 = vpop.permute.xlu0 %433
    %v435 = vlaneseq
    %v436 = vshrl.u32 %v435, 7
    %v437 = vsub.s32 2, %v436
    %v438 = vrot.slane %v364, %v437
    %440 = vbcast.lane.b32.xlu0 %v438, 256
    %v441 = vpop.permute.xlu0 %440
    %v442 = vlaneseq
    %v443 = vshrl.u32 %v442, 7
    %v444 = vsub.s32 3, %v443
    %v445 = vrot.slane %v364, %v444
    %447 = vbcast.lane.b32.xlu0 %v445, 256
    %v448 = vpop.permute.xlu0 %447
    %v449 = vlaneseq
    %v450 = vshrl.u32 %v449, 7
    %v451 = vsub.s32 4, %v450
    %v452 = vrot.slane %v364, %v451
    %454 = vbcast.lane.b32.xlu0 %v452, 256
    %v455 = vpop.permute.xlu0 %454
    %v456 = vlaneseq
    %v457 = vshrl.u32 %v456, 7
    %v458 = vsub.s32 5, %v457
    %v459 = vrot.slane %v364, %v458
    %461 = vbcast.lane.b32.xlu0 %v459, 256
    %v462 = vpop.permute.xlu0 %461
    %v463 = vlaneseq
    %v464 = vshrl.u32 %v463, 7
    %v465 = vsub.s32 6, %v464
    %v466 = vrot.slane %v364, %v465
    %468 = vbcast.lane.b32.xlu0 %v466, 256
    %v469 = vpop.permute.xlu0 %468
    %v470 = vlaneseq
    %v471 = vshrl.u32 %v470, 7
    %v472 = vsub.s32 7, %v471
    %v473 = vrot.slane %v364, %v472
    %475 = vbcast.lane.b32.xlu0 %v473, 256
    %v476 = vpop.permute.xlu0 %475
    %vm477 = vcmp.eq.s32.totalorder %v70, %v371
    %vm478 = vcmp.eq.s32.totalorder %v70, %v378
    %vm479 = vcmp.eq.s32.totalorder %v70, %v385
    %vm480 = vcmp.eq.s32.totalorder %v70, %v392
    %vm481 = vcmp.eq.s32.totalorder %v70, %v399
    %vm482 = vcmp.eq.s32.totalorder %v70, %v406
    %vm483 = vcmp.eq.s32.totalorder %v70, %v413
    %vm484 = vcmp.eq.s32.totalorder %v70, %v420
    %vm485 = vcmp.eq.s32.totalorder %v70, %v427
    %vm486 = vcmp.eq.s32.totalorder %v70, %v434
    %vm487 = vcmp.eq.s32.totalorder %v70, %v441
    %vm488 = vcmp.eq.s32.totalorder %v70, %v448
    %vm489 = vcmp.eq.s32.totalorder %v70, %v455
    %vm490 = vcmp.eq.s32.totalorder %v70, %v462
    %vm491 = vcmp.eq.s32.totalorder %v70, %v469
    %vm492 = vcmp.eq.s32.totalorder %v70, %v476
    %v493 = vsel %vm477, 1, 0
    %v494 = vsel %vm478, 1, 0
    %v495 = vsel %vm479, 1, 0
    %v496 = vsel %vm480, 1, 0
    %v497 = vsel %vm481, 1, 0
    %v498 = vsel %vm482, 1, 0
    %v499 = vsel %vm483, 1, 0
    %v500 = vsel %vm484, 1, 0
    %v501 = vsel %vm485, 1, 0
    %v502 = vsel %vm486, 1, 0
    %v503 = vsel %vm487, 1, 0
    %v504 = vsel %vm488, 1, 0
    %v505 = vsel %vm489, 1, 0
    %v506 = vsel %vm490, 1, 0
    %v507 = vsel %vm491, 1, 0
    %v508 = vsel %vm492, 1, 0
    %v509 = vcvt.s32.f32 %v493
    %v510 = vcvt.s32.f32 %v494
    %v511 = vcvt.s32.f32 %v495
    %v512 = vcvt.s32.f32 %v496
    %v513 = vcvt.s32.f32 %v497
    %v514 = vcvt.s32.f32 %v498
    %v515 = vcvt.s32.f32 %v499
    %v516 = vcvt.s32.f32 %v500
    %v517 = vcvt.s32.f32 %v501
    %v518 = vcvt.s32.f32 %v502
    %v519 = vcvt.s32.f32 %v503
    %v520 = vcvt.s32.f32 %v504
    %v521 = vcvt.s32.f32 %v505
    %v522 = vcvt.s32.f32 %v506
    %v523 = vcvt.s32.f32 %v507
    %v524 = vcvt.s32.f32 %v508
    %v525 = vld [vmem:[%s5] sm:$0xff]
    %v526 = vld [vmem:[%s5 + $0x8] sm:$0xff]
    %v527 = vlaneseq
    %v528 = vshrl.u32 %v527, 7
    %v529 = vsub.s32 0, %v528
    %v530 = vrot.slane %v525, %v529
    %532 = vbcast.lane.b32.xlu0 %v530, 256
    %v533 = vpop.permute.xlu0 %532
    %v534 = vlaneseq
    %v535 = vshrl.u32 %v534, 7
    %v536 = vsub.s32 1, %v535
    %v537 = vrot.slane %v525, %v536
    %539 = vbcast.lane.b32.xlu0 %v537, 256
    %v540 = vpop.permute.xlu0 %539
    %v541 = vlaneseq
    %v542 = vshrl.u32 %v541, 7
    %v543 = vsub.s32 2, %v542
    %v544 = vrot.slane %v525, %v543
    %546 = vbcast.lane.b32.xlu0 %v544, 256
    %v547 = vpop.permute.xlu0 %546
    %v548 = vlaneseq
    %v549 = vshrl.u32 %v548, 7
    %v550 = vsub.s32 3, %v549
    %v551 = vrot.slane %v525, %v550
    %553 = vbcast.lane.b32.xlu0 %v551, 256
    %v554 = vpop.permute.xlu0 %553
    %v555 = vlaneseq
    %v556 = vshrl.u32 %v555, 7
    %v557 = vsub.s32 4, %v556
    %v558 = vrot.slane %v525, %v557
    %560 = vbcast.lane.b32.xlu0 %v558, 256
    %v561 = vpop.permute.xlu0 %560
    %v562 = vlaneseq
    %v563 = vshrl.u32 %v562, 7
    %v564 = vsub.s32 5, %v563
    %v565 = vrot.slane %v525, %v564
    %567 = vbcast.lane.b32.xlu0 %v565, 256
    %v568 = vpop.permute.xlu0 %567
    %v569 = vlaneseq
    %v570 = vshrl.u32 %v569, 7
    %v571 = vsub.s32 6, %v570
    %v572 = vrot.slane %v525, %v571
    %574 = vbcast.lane.b32.xlu0 %v572, 256
    %v575 = vpop.permute.xlu0 %574
    %v576 = vlaneseq
    %v577 = vshrl.u32 %v576, 7
    %v578 = vsub.s32 7, %v577
    %v579 = vrot.slane %v525, %v578
    %581 = vbcast.lane.b32.xlu0 %v579, 256
    %v582 = vpop.permute.xlu0 %581
    %v583 = vlaneseq
    %v584 = vshrl.u32 %v583, 7
    %v585 = vsub.s32 0, %v584
    %v586 = vrot.slane %v526, %v585
    %588 = vbcast.lane.b32.xlu0 %v586, 256
    %v589 = vpop.permute.xlu0 %588
    %v590 = vlaneseq
    %v591 = vshrl.u32 %v590, 7
    %v592 = vsub.s32 1, %v591
    %v593 = vrot.slane %v526, %v592
    %595 = vbcast.lane.b32.xlu0 %v593, 256
    %v596 = vpop.permute.xlu0 %595
    %v597 = vlaneseq
    %v598 = vshrl.u32 %v597, 7
    %v599 = vsub.s32 2, %v598
    %v600 = vrot.slane %v526, %v599
    %602 = vbcast.lane.b32.xlu0 %v600, 256
    %v603 = vpop.permute.xlu0 %602
    %v604 = vlaneseq
    %v605 = vshrl.u32 %v604, 7
    %v606 = vsub.s32 3, %v605
    %v607 = vrot.slane %v526, %v606
    %609 = vbcast.lane.b32.xlu0 %v607, 256
    %v610 = vpop.permute.xlu0 %609
    %v611 = vlaneseq
    %v612 = vshrl.u32 %v611, 7
    %v613 = vsub.s32 4, %v612
    %v614 = vrot.slane %v526, %v613
    %616 = vbcast.lane.b32.xlu0 %v614, 256
    %v617 = vpop.permute.xlu0 %616
    %v618 = vlaneseq
    %v619 = vshrl.u32 %v618, 7
    %v620 = vsub.s32 5, %v619
    %v621 = vrot.slane %v526, %v620
    %623 = vbcast.lane.b32.xlu0 %v621, 256
    %v624 = vpop.permute.xlu0 %623
    %v625 = vlaneseq
    %v626 = vshrl.u32 %v625, 7
    %v627 = vsub.s32 6, %v626
    %v628 = vrot.slane %v526, %v627
    %630 = vbcast.lane.b32.xlu0 %v628, 256
    %v631 = vpop.permute.xlu0 %630
    %v632 = vlaneseq
    %v633 = vshrl.u32 %v632, 7
    %v634 = vsub.s32 7, %v633
    %v635 = vrot.slane %v526, %v634
    %637 = vbcast.lane.b32.xlu0 %v635, 256
    %v638 = vpop.permute.xlu0 %637
    %v639 = vmul.f32 %v509, %v533
    %v640 = vmul.f32 %v510, %v540
    %v641 = vmul.f32 %v511, %v547
    %v642 = vmul.f32 %v512, %v554
    %v643 = vmul.f32 %v513, %v561
    %v644 = vmul.f32 %v514, %v568
    %v645 = vmul.f32 %v515, %v575
    %v646 = vmul.f32 %v516, %v582
    %v647 = vmul.f32 %v517, %v589
    %v648 = vmul.f32 %v518, %v596
    %v649 = vmul.f32 %v519, %v603
    %v650 = vmul.f32 %v520, %v610
    %v651 = vmul.f32 %v521, %v617
    %v652 = vmul.f32 %v522, %v624
    %v653 = vmul.f32 %v523, %v631
    %v654 = vmul.f32 %v524, %v638
    %vm655 = vcmask 60416
    %v656 = vsel %vm655, %v347, 0.0
    %v657 = vrot.slane %v656, 4
    %v658 = vadd.f32 %v656, %v657
    %v659 = vrot.slane %v658, 2
    %v660 = vadd.f32 %v658, %v659
    %v661 = vrot.slane %v660, 1
    %v662 = vadd.f32 %v660, %v661
    %v663 = vsel %vm655, %v348, 0.0
    %v664 = vrot.slane %v663, 4
    %v665 = vadd.f32 %v663, %v664
    %v666 = vrot.slane %v665, 2
    %v667 = vadd.f32 %v665, %v666
    %v668 = vrot.slane %v667, 1
    %v669 = vadd.f32 %v667, %v668
    %v670 = vsel %vm655, %v349, 0.0
    %v671 = vrot.slane %v670, 4
    %v672 = vadd.f32 %v670, %v671
    %v673 = vrot.slane %v672, 2
    %v674 = vadd.f32 %v672, %v673
    %v675 = vrot.slane %v674, 1
    %v676 = vadd.f32 %v674, %v675
    %v677 = vsel %vm655, %v350, 0.0
    %v678 = vrot.slane %v677, 4
    %v679 = vadd.f32 %v677, %v678
    %v680 = vrot.slane %v679, 2
    %v681 = vadd.f32 %v679, %v680
    %v682 = vrot.slane %v681, 1
    %v683 = vadd.f32 %v681, %v682
    %v684 = vsel %vm655, %v351, 0.0
    %v685 = vrot.slane %v684, 4
    %v686 = vadd.f32 %v684, %v685
    %v687 = vrot.slane %v686, 2
    %v688 = vadd.f32 %v686, %v687
    %v689 = vrot.slane %v688, 1
    %v690 = vadd.f32 %v688, %v689
    %v691 = vsel %vm655, %v352, 0.0
    %v692 = vrot.slane %v691, 4
    %v693 = vadd.f32 %v691, %v692
    %v694 = vrot.slane %v693, 2
    %v695 = vadd.f32 %v693, %v694
    %v696 = vrot.slane %v695, 1
    %v697 = vadd.f32 %v695, %v696
    %v698 = vsel %vm655, %v353, 0.0
    %v699 = vrot.slane %v698, 4
    %v700 = vadd.f32 %v698, %v699
    %v701 = vrot.slane %v700, 2
    %v702 = vadd.f32 %v700, %v701
    %v703 = vrot.slane %v702, 1
    %v704 = vadd.f32 %v702, %v703
    %v705 = vsel %vm655, %v354, 0.0
    %v706 = vrot.slane %v705, 4
    %v707 = vadd.f32 %v705, %v706
    %v708 = vrot.slane %v707, 2
    %v709 = vadd.f32 %v707, %v708
    %v710 = vrot.slane %v709, 1
    %v711 = vadd.f32 %v709, %v710
    %v712 = vsel %vm655, %v355, 0.0
    %v713 = vrot.slane %v712, 4
    %v714 = vadd.f32 %v712, %v713
    %v715 = vrot.slane %v714, 2
    %v716 = vadd.f32 %v714, %v715
    %v717 = vrot.slane %v716, 1
    %v718 = vadd.f32 %v716, %v717
    %v719 = vsel %vm655, %v356, 0.0
    %v720 = vrot.slane %v719, 4
    %v721 = vadd.f32 %v719, %v720
    %v722 = vrot.slane %v721, 2
    %v723 = vadd.f32 %v721, %v722
    %v724 = vrot.slane %v723, 1
    %v725 = vadd.f32 %v723, %v724
    %v726 = vsel %vm655, %v357, 0.0
    %v727 = vrot.slane %v726, 4
    %v728 = vadd.f32 %v726, %v727
    %v729 = vrot.slane %v728, 2
    %v730 = vadd.f32 %v728, %v729
    %v731 = vrot.slane %v730, 1
    %v732 = vadd.f32 %v730, %v731
    %v733 = vsel %vm655, %v358, 0.0
    %v734 = vrot.slane %v733, 4
    %v735 = vadd.f32 %v733, %v734
    %v736 = vrot.slane %v735, 2
    %v737 = vadd.f32 %v735, %v736
    %v738 = vrot.slane %v737, 1
    %v739 = vadd.f32 %v737, %v738
    %v740 = vsel %vm655, %v359, 0.0
    %v741 = vrot.slane %v740, 4
    %v742 = vadd.f32 %v740, %v741
    %v743 = vrot.slane %v742, 2
    %v744 = vadd.f32 %v742, %v743
    %v745 = vrot.slane %v744, 1
    %v746 = vadd.f32 %v744, %v745
    %v747 = vsel %vm655, %v360, 0.0
    %v748 = vrot.slane %v747, 4
    %v749 = vadd.f32 %v747, %v748
    %v750 = vrot.slane %v749, 2
    %v751 = vadd.f32 %v749, %v750
    %v752 = vrot.slane %v751, 1
    %v753 = vadd.f32 %v751, %v752
    %v754 = vsel %vm655, %v361, 0.0
    %v755 = vrot.slane %v754, 4
    %v756 = vadd.f32 %v754, %v755
    %v757 = vrot.slane %v756, 2
    %v758 = vadd.f32 %v756, %v757
    %v759 = vrot.slane %v758, 1
    %v760 = vadd.f32 %v758, %v759
    %v761 = vsel %vm655, %v362, 0.0
    %v762 = vrot.slane %v761, 4
    %v763 = vadd.f32 %v761, %v762
    %v764 = vrot.slane %v763, 2
    %v765 = vadd.f32 %v763, %v764
    %v766 = vrot.slane %v765, 1
    %v767 = vadd.f32 %v765, %v766
    %v768 = vsel %vm655, %v639, 0.0
    %v769 = vrot.slane %v768, 4
    %v770 = vadd.f32 %v768, %v769
    %v771 = vrot.slane %v770, 2
    %v772 = vadd.f32 %v770, %v771
    %v773 = vrot.slane %v772, 1
    %v774 = vadd.f32 %v772, %v773
    %v775 = vsel %vm655, %v640, 0.0
    %v776 = vrot.slane %v775, 4
    %v777 = vadd.f32 %v775, %v776
    %v778 = vrot.slane %v777, 2
    %v779 = vadd.f32 %v777, %v778
    %v780 = vrot.slane %v779, 1
    %v781 = vadd.f32 %v779, %v780
    %v782 = vsel %vm655, %v641, 0.0
    %v783 = vrot.slane %v782, 4
    %v784 = vadd.f32 %v782, %v783
    %v785 = vrot.slane %v784, 2
    %v786 = vadd.f32 %v784, %v785
    %v787 = vrot.slane %v786, 1
    %v788 = vadd.f32 %v786, %v787
    %v789 = vsel %vm655, %v642, 0.0
    %v790 = vrot.slane %v789, 4
    %v791 = vadd.f32 %v789, %v790
    %v792 = vrot.slane %v791, 2
    %v793 = vadd.f32 %v791, %v792
    %v794 = vrot.slane %v793, 1
    %v795 = vadd.f32 %v793, %v794
    %v796 = vsel %vm655, %v643, 0.0
    %v797 = vrot.slane %v796, 4
    %v798 = vadd.f32 %v796, %v797
    %v799 = vrot.slane %v798, 2
    %v800 = vadd.f32 %v798, %v799
    %v801 = vrot.slane %v800, 1
    %v802 = vadd.f32 %v800, %v801
    %v803 = vsel %vm655, %v644, 0.0
    %v804 = vrot.slane %v803, 4
    %v805 = vadd.f32 %v803, %v804
    %v806 = vrot.slane %v805, 2
    %v807 = vadd.f32 %v805, %v806
    %v808 = vrot.slane %v807, 1
    %v809 = vadd.f32 %v807, %v808
    %v810 = vsel %vm655, %v645, 0.0
    %v811 = vrot.slane %v810, 4
    %v812 = vadd.f32 %v810, %v811
    %v813 = vrot.slane %v812, 2
    %v814 = vadd.f32 %v812, %v813
    %v815 = vrot.slane %v814, 1
    %v816 = vadd.f32 %v814, %v815
    %v817 = vsel %vm655, %v646, 0.0
    %v818 = vrot.slane %v817, 4
    %v819 = vadd.f32 %v817, %v818
    %v820 = vrot.slane %v819, 2
    %v821 = vadd.f32 %v819, %v820
    %v822 = vrot.slane %v821, 1
    %v823 = vadd.f32 %v821, %v822
    %v824 = vsel %vm655, %v647, 0.0
    %v825 = vrot.slane %v824, 4
    %v826 = vadd.f32 %v824, %v825
    %v827 = vrot.slane %v826, 2
    %v828 = vadd.f32 %v826, %v827
    %v829 = vrot.slane %v828, 1
    %v830 = vadd.f32 %v828, %v829
    %v831 = vsel %vm655, %v648, 0.0
    %v832 = vrot.slane %v831, 4
    %v833 = vadd.f32 %v831, %v832
    %v834 = vrot.slane %v833, 2
    %v835 = vadd.f32 %v833, %v834
    %v836 = vrot.slane %v835, 1
    %v837 = vadd.f32 %v835, %v836
    %v838 = vsel %vm655, %v649, 0.0
    %v839 = vrot.slane %v838, 4
    %v840 = vadd.f32 %v838, %v839
    %v841 = vrot.slane %v840, 2
    %v842 = vadd.f32 %v840, %v841
    %v843 = vrot.slane %v842, 1
    %v844 = vadd.f32 %v842, %v843
    %v845 = vsel %vm655, %v650, 0.0
    %v846 = vrot.slane %v845, 4
    %v847 = vadd.f32 %v845, %v846
    %v848 = vrot.slane %v847, 2
    %v849 = vadd.f32 %v847, %v848
    %v850 = vrot.slane %v849, 1
    %v851 = vadd.f32 %v849, %v850
    %v852 = vsel %vm655, %v651, 0.0
    %v853 = vrot.slane %v852, 4
    %v854 = vadd.f32 %v852, %v853
    %v855 = vrot.slane %v854, 2
    %v856 = vadd.f32 %v854, %v855
    %v857 = vrot.slane %v856, 1
    %v858 = vadd.f32 %v856, %v857
    %v859 = vsel %vm655, %v652, 0.0
    %v860 = vrot.slane %v859, 4
    %v861 = vadd.f32 %v859, %v860
    %v862 = vrot.slane %v861, 2
    %v863 = vadd.f32 %v861, %v862
    %v864 = vrot.slane %v863, 1
    %v865 = vadd.f32 %v863, %v864
    %v866 = vsel %vm655, %v653, 0.0
    %v867 = vrot.slane %v866, 4
    %v868 = vadd.f32 %v866, %v867
    %v869 = vrot.slane %v868, 2
    %v870 = vadd.f32 %v868, %v869
    %v871 = vrot.slane %v870, 1
    %v872 = vadd.f32 %v870, %v871
    %v873 = vsel %vm655, %v654, 0.0
    %v874 = vrot.slane %v873, 4
    %v875 = vadd.f32 %v873, %v874
    %v876 = vrot.slane %v875, 2
    %v877 = vadd.f32 %v875, %v876
    %v878 = vrot.slane %v877, 1
    %v879 = vadd.f32 %v877, %v878
    %vm880 = vcmask 1040384
    %v881 = vsel %vm880, %v662, %v774
    %v882 = vsel %vm880, %v669, %v781
    %v883 = vsel %vm880, %v676, %v788
    %v884 = vsel %vm880, %v683, %v795
    %v885 = vsel %vm880, %v690, %v802
    %v886 = vsel %vm880, %v697, %v809
    %v887 = vsel %vm880, %v704, %v816
    %v888 = vsel %vm880, %v711, %v823
    %v889 = vsel %vm880, %v718, %v830
    %v890 = vsel %vm880, %v725, %v837
    %v891 = vsel %vm880, %v732, %v844
    %v892 = vsel %vm880, %v739, %v851
    %v893 = vsel %vm880, %v746, %v858
    %v894 = vsel %vm880, %v753, %v865
    %v895 = vsel %vm880, %v760, %v872
    %v896 = vsel %vm880, %v767, %v879
    %v897 = vpack.c.bf16 %v881, %v881
    %v898 = vpack.c.bf16 %v882, %v882
    %v899 = vpack.c.bf16 %v883, %v883
    %v900 = vpack.c.bf16 %v884, %v884
    %v901 = vpack.c.bf16 %v885, %v885
    %v902 = vpack.c.bf16 %v886, %v886
    %v903 = vpack.c.bf16 %v887, %v887
    %v904 = vpack.c.bf16 %v888, %v888
    %v905 = vpack.c.bf16 %v889, %v889
    %v906 = vpack.c.bf16 %v890, %v890
    %v907 = vpack.c.bf16 %v891, %v891
    %v908 = vpack.c.bf16 %v892, %v892
    %v909 = vpack.c.bf16 %v893, %v893
    %v910 = vpack.c.bf16 %v894, %v894
    %v911 = vpack.c.bf16 %v895, %v895
    %v912 = vpack.c.bf16 %v896, %v896
    %v913 = vld [vmem:[#allocation2] sm:$0x3]
    %v914 = vld [vmem:[#allocation2 + $0x2] sm:$0x3]
    %v915 = vld [vmem:[#allocation2 + $0x4] sm:$0x3]
    %v916 = vld [vmem:[#allocation2 + $0x6] sm:$0x3]
    %v917 = vld [vmem:[#allocation2 + $0x8] sm:$0x3]
    %v918 = vld [vmem:[#allocation2 + $0xa] sm:$0x3]
    %v919 = vld [vmem:[#allocation2 + $0xc] sm:$0x3]
    %v920 = vld [vmem:[#allocation2 + $0xe] sm:$0x3]
    %v921 = vld [vmem:[#allocation2 + $0x10] sm:$0x3]
    %v922 = vld [vmem:[#allocation2 + $0x12] sm:$0x3]
    %v923 = vld [vmem:[#allocation2 + $0x14] sm:$0x3]
    %v924 = vld [vmem:[#allocation2 + $0x16] sm:$0x3]
    %v925 = vld [vmem:[#allocation2 + $0x18] sm:$0x3]
    %v926 = vld [vmem:[#allocation2 + $0x1a] sm:$0x3]
    %v927 = vld [vmem:[#allocation2 + $0x1c] sm:$0x3]
    %v928 = vld [vmem:[#allocation2 + $0x1e] sm:$0x3]
    %v929 = vld [vmem:[%s0] sm:$0xf]
    %v930 = vld [vmem:[%s0 + $0x4] sm:$0xf]
    %v931 = vld [vmem:[%s0 + $0x8] sm:$0xf]
    %v932 = vld [vmem:[%s0 + $0xc] sm:$0xf]
    %v933 = vld [vmem:[%s0 + $0x10] sm:$0xf]
    %v934 = vld [vmem:[%s0 + $0x14] sm:$0xf]
    %v935 = vld [vmem:[%s0 + $0x18] sm:$0xf]
    %v936 = vld [vmem:[%s0 + $0x1c] sm:$0xf]
    %v937 = vld [vmem:[%s0 + $0x20] sm:$0xf]
    %v938 = vld [vmem:[%s0 + $0x24] sm:$0xf]
    %v939 = vld [vmem:[%s0 + $0x28] sm:$0xf]
    %v940 = vld [vmem:[%s0 + $0x2c] sm:$0xf]
    %v941 = vld [vmem:[%s0 + $0x30] sm:$0xf]
    %v942 = vld [vmem:[%s0 + $0x34] sm:$0xf]
    %v943 = vld [vmem:[%s0 + $0x38] sm:$0xf]
    %v944 = vld [vmem:[%s0 + $0x3c] sm:$0xf]
    %vm945 = vcmask 64512
    %v947 = vsel %vm945, %v897, 0
    %vm949 = vcmask 1043456
    %v951 = vsel %vm949, %v929, 0
    %953 = vmatprep.subr.bf16.mxu0 0
    %954 = vmatpush1.bf16.msra.mxu0 0
    %955 = vmatprep.subr.bf16.mxu0 0
    %956 = vmatpush1.bf16.msra.mxu0 0
    %957 = vmatprep.subr.bf16.mxu0 0
    %958 = vmatpush1.bf16.msra.mxu0 0
    %959 = vmatprep.subr.bf16.mxu0 0
    %960 = vmatpush1.bf16.msra.mxu0 0
    %961 = vmatprep.subr.bf16.mxu0 0
    %962 = vmatpush1.bf16.msra.mxu0 0
    %963 = vmatprep.subr.bf16.mxu0 0
    %964 = vmatpush1.bf16.msra.mxu0 0
    %965 = vmatprep.subr.bf16.mxu0 0
    %966 = vmatpush1.bf16.msra.mxu0 0
    %967 = vmatprep.subr.bf16.mxu0 0
    %968 = vmatpush1.bf16.msra.mxu0 %v951
    %969 = vmatprep.subr.bf16.mxu0 0
    %970 = vmatpush2.bf16.msra.mxu0 0
    %971 = vmatprep.subr.bf16.mxu0 0
    %972 = vmatpush2.bf16.msra.mxu0 0
    %973 = vmatprep.subr.bf16.mxu0 0
    %974 = vmatpush2.bf16.msra.mxu0 0
    %975 = vmatprep.subr.bf16.mxu0 0
    %976 = vmatpush2.bf16.msra.mxu0 0
    %977 = vmatprep.subr.bf16.mxu0 0
    %978 = vmatpush2.bf16.msra.mxu0 0
    %979 = vmatprep.subr.bf16.mxu0 0
    %980 = vmatpush2.bf16.msra.mxu0 0
    %981 = vmatprep.subr.bf16.mxu0 0
    %982 = vmatpush2.bf16.msra.mxu0 0
    %983 = vmatprep.subr.bf16.mxu0 0
    %984 = vmatpush2.bf16.msra.mxu0 0
    %985 = vmatprep.mubr.bf16.mxu0 0
    %986 = vmatmul.mubr.bf16.gmra.mxu0 %v947
    %v987 = vpop.f32.mrf.mxu0
    %v988 = vadd.f32 0.0, %v987
    %v989 = vpop.f32.mrf.mxu0
    %v990 = vpop.f32.mrf.mxu0
    %v991 = vpop.f32.mrf.mxu0
    %992 = vdwg.mxu0
    %v994 = vsel %vm945, %v898, 0
    %v997 = vsel %vm949, %v930, 0
    %999 = vmatprep.subr.bf16.mxu0 0
    %1000 = vmatpush1.bf16.msra.mxu0 0
    %1001 = vmatprep.subr.bf16.mxu0 0
    %1002 = vmatpush1.bf16.msra.mxu0 0
    %1003 = vmatprep.subr.bf16.mxu0 0
    %1004 = vmatpush1.bf16.msra.mxu0 0
    %1005 = vmatprep.subr.bf16.mxu0 0
    %1006 = vmatpush1.bf16.msra.mxu0 0
    %1007 = vmatprep.subr.bf16.mxu0 0
    %1008 = vmatpush1.bf16.msra.mxu0 0
    %1009 = vmatprep.subr.bf16.mxu0 0
    %1010 = vmatpush1.bf16.msra.mxu0 0
    %1011 = vmatprep.subr.bf16.mxu0 0
    %1012 = vmatpush1.bf16.msra.mxu0 0
    %1013 = vmatprep.subr.bf16.mxu0 0
    %1014 = vmatpush1.bf16.msra.mxu0 %v997
    %1015 = vmatprep.subr.bf16.mxu0 0
    %1016 = vmatpush2.bf16.msra.mxu0 0
    %1017 = vmatprep.subr.bf16.mxu0 0
    %1018 = vmatpush2.bf16.msra.mxu0 0
    %1019 = vmatprep.subr.bf16.mxu0 0
    %1020 = vmatpush2.bf16.msra.mxu0 0
    %1021 = vmatprep.subr.bf16.mxu0 0
    %1022 = vmatpush2.bf16.msra.mxu0 0
    %1023 = vmatprep.subr.bf16.mxu0 0
    %1024 = vmatpush2.bf16.msra.mxu0 0
    %1025 = vmatprep.subr.bf16.mxu0 0
    %1026 = vmatpush2.bf16.msra.mxu0 0
    %1027 = vmatprep.subr.bf16.mxu0 0
    %1028 = vmatpush2.bf16.msra.mxu0 0
    %1029 = vmatprep.subr.bf16.mxu0 0
    %1030 = vmatpush2.bf16.msra.mxu0 0
    %1031 = vmatprep.mubr.bf16.mxu0 0
    %1032 = vmatmul.mubr.bf16.gmra.mxu0 %v994
    %v1033 = vpop.f32.mrf.mxu0
    %v1034 = vadd.f32 0.0, %v1033
    %v1035 = vpop.f32.mrf.mxu0
    %v1036 = vpop.f32.mrf.mxu0
    %v1037 = vpop.f32.mrf.mxu0
    %1038 = vdwg.mxu0
    %v1040 = vsel %vm945, %v899, 0
    %v1043 = vsel %vm949, %v931, 0
    %1045 = vmatprep.subr.bf16.mxu0 0
    %1046 = vmatpush1.bf16.msra.mxu0 0
    %1047 = vmatprep.subr.bf16.mxu0 0
    %1048 = vmatpush1.bf16.msra.mxu0 0
    %1049 = vmatprep.subr.bf16.mxu0 0
    %1050 = vmatpush1.bf16.msra.mxu0 0
    %1051 = vmatprep.subr.bf16.mxu0 0
    %1052 = vmatpush1.bf16.msra.mxu0 0
    %1053 = vmatprep.subr.bf16.mxu0 0
    %1054 = vmatpush1.bf16.msra.mxu0 0
    %1055 = vmatprep.subr.bf16.mxu0 0
    %1056 = vmatpush1.bf16.msra.mxu0 0
    %1057 = vmatprep.subr.bf16.mxu0 0
    %1058 = vmatpush1.bf16.msra.mxu0 0
    %1059 = vmatprep.subr.bf16.mxu0 0
    %1060 = vmatpush1.bf16.msra.mxu0 %v1043
    %1061 = vmatprep.subr.bf16.mxu0 0
    %1062 = vmatpush2.bf16.msra.mxu0 0
    %1063 = vmatprep.subr.bf16.mxu0 0
    %1064 = vmatpush2.bf16.msra.mxu0 0
    %1065 = vmatprep.subr.bf16.mxu0 0
    %1066 = vmatpush2.bf16.msra.mxu0 0
    %1067 = vmatprep.subr.bf16.mxu0 0
    %1068 = vmatpush2.bf16.msra.mxu0 0
    %1069 = vmatprep.subr.bf16.mxu0 0
    %1070 = vmatpush2.bf16.msra.mxu0 0
    %1071 = vmatprep.subr.bf16.mxu0 0
    %1072 = vmatpush2.bf16.msra.mxu0 0
    %1073 = vmatprep.subr.bf16.mxu0 0
    %1074 = vmatpush2.bf16.msra.mxu0 0
    %1075 = vmatprep.subr.bf16.mxu0 0
    %1076 = vmatpush2.bf16.msra.mxu0 0
    %1077 = vmatprep.mubr.bf16.mxu0 0
    %1078 = vmatmul.mubr.bf16.gmra.mxu0 %v1040
    %v1079 = vpop.f32.mrf.mxu0
    %v1080 = vadd.f32 0.0, %v1079
    %v1081 = vpop.f32.mrf.mxu0
    %v1082 = vpop.f32.mrf.mxu0
    %v1083 = vpop.f32.mrf.mxu0
    %1084 = vdwg.mxu0
    %v1086 = vsel %vm945, %v900, 0
    %v1089 = vsel %vm949, %v932, 0
    %1091 = vmatprep.subr.bf16.mxu0 0
    %1092 = vmatpush1.bf16.msra.mxu0 0
    %1093 = vmatprep.subr.bf16.mxu0 0
    %1094 = vmatpush1.bf16.msra.mxu0 0
    %1095 = vmatprep.subr.bf16.mxu0 0
    %1096 = vmatpush1.bf16.msra.mxu0 0
    %1097 = vmatprep.subr.bf16.mxu0 0
    %1098 = vmatpush1.bf16.msra.mxu0 0
    %1099 = vmatprep.subr.bf16.mxu0 0
    %1100 = vmatpush1.bf16.msra.mxu0 0
    %1101 = vmatprep.subr.bf16.mxu0 0
    %1102 = vmatpush1.bf16.msra.mxu0 0
    %1103 = vmatprep.subr.bf16.mxu0 0
    %1104 = vmatpush1.bf16.msra.mxu0 0
    %1105 = vmatprep.subr.bf16.mxu0 0
    %1106 = vmatpush1.bf16.msra.mxu0 %v1089
    %1107 = vmatprep.subr.bf16.mxu0 0
    %1108 = vmatpush2.bf16.msra.mxu0 0
    %1109 = vmatprep.subr.bf16.mxu0 0
    %1110 = vmatpush2.bf16.msra.mxu0 0
    %1111 = vmatprep.subr.bf16.mxu0 0
    %1112 = vmatpush2.bf16.msra.mxu0 0
    %1113 = vmatprep.subr.bf16.mxu0 0
    %1114 = vmatpush2.bf16.msra.mxu0 0
    %1115 = vmatprep.subr.bf16.mxu0 0
    %1116 = vmatpush2.bf16.msra.mxu0 0
    %1117 = vmatprep.subr.bf16.mxu0 0
    %1118 = vmatpush2.bf16.msra.mxu0 0
    %1119 = vmatprep.subr.bf16.mxu0 0
    %1120 = vmatpush2.bf16.msra.mxu0 0
    %1121 = vmatprep.subr.bf16.mxu0 0
    %1122 = vmatpush2.bf16.msra.mxu0 0
    %1123 = vmatprep.mubr.bf16.mxu0 0
    %1124 = vmatmul.mubr.bf16.gmra.mxu0 %v1086
    %v1125 = vpop.f32.mrf.mxu0
    %v1126 = vadd.f32 0.0, %v1125
    %v1127 = vpop.f32.mrf.mxu0
    %v1128 = vpop.f32.mrf.mxu0
    %v1129 = vpop.f32.mrf.mxu0
    %1130 = vdwg.mxu0
    %v1132 = vsel %vm945, %v901, 0
    %v1135 = vsel %vm949, %v933, 0
    %1137 = vmatprep.subr.bf16.mxu0 0
    %1138 = vmatpush1.bf16.msra.mxu0 0
    %1139 = vmatprep.subr.bf16.mxu0 0
    %1140 = vmatpush1.bf16.msra.mxu0 0
    %1141 = vmatprep.subr.bf16.mxu0 0
    %1142 = vmatpush1.bf16.msra.mxu0 0
    %1143 = vmatprep.subr.bf16.mxu0 0
    %1144 = vmatpush1.bf16.msra.mxu0 0
    %1145 = vmatprep.subr.bf16.mxu0 0
    %1146 = vmatpush1.bf16.msra.mxu0 0
    %1147 = vmatprep.subr.bf16.mxu0 0
    %1148 = vmatpush1.bf16.msra.mxu0 0
    %1149 = vmatprep.subr.bf16.mxu0 0
    %1150 = vmatpush1.bf16.msra.mxu0 0
    %1151 = vmatprep.subr.bf16.mxu0 0
    %1152 = vmatpush1.bf16.msra.mxu0 %v1135
    %1153 = vmatprep.subr.bf16.mxu0 0
    %1154 = vmatpush2.bf16.msra.mxu0 0
    %1155 = vmatprep.subr.bf16.mxu0 0
    %1156 = vmatpush2.bf16.msra.mxu0 0
    %1157 = vmatprep.subr.bf16.mxu0 0
    %1158 = vmatpush2.bf16.msra.mxu0 0
    %1159 = vmatprep.subr.bf16.mxu0 0
    %1160 = vmatpush2.bf16.msra.mxu0 0
    %1161 = vmatprep.subr.bf16.mxu0 0
    %1162 = vmatpush2.bf16.msra.mxu0 0
    %1163 = vmatprep.subr.bf16.mxu0 0
    %1164 = vmatpush2.bf16.msra.mxu0 0
    %1165 = vmatprep.subr.bf16.mxu0 0
    %1166 = vmatpush2.bf16.msra.mxu0 0
    %1167 = vmatprep.subr.bf16.mxu0 0
    %1168 = vmatpush2.bf16.msra.mxu0 0
    %1169 = vmatprep.mubr.bf16.mxu0 0
    %1170 = vmatmul.mubr.bf16.gmra.mxu0 %v1132
    %v1171 = vpop.f32.mrf.mxu0
    %v1172 = vadd.f32 0.0, %v1171
    %v1173 = vpop.f32.mrf.mxu0
    %v1174 = vpop.f32.mrf.mxu0
    %v1175 = vpop.f32.mrf.mxu0
    %1176 = vdwg.mxu0
    %v1178 = vsel %vm945, %v902, 0
    %v1181 = vsel %vm949, %v934, 0
    %1183 = vmatprep.subr.bf16.mxu0 0
    %1184 = vmatpush1.bf16.msra.mxu0 0
    %1185 = vmatprep.subr.bf16.mxu0 0
    %1186 = vmatpush1.bf16.msra.mxu0 0
    %1187 = vmatprep.subr.bf16.mxu0 0
    %1188 = vmatpush1.bf16.msra.mxu0 0
    %1189 = vmatprep.subr.bf16.mxu0 0
    %1190 = vmatpush1.bf16.msra.mxu0 0
    %1191 = vmatprep.subr.bf16.mxu0 0
    %1192 = vmatpush1.bf16.msra.mxu0 0
    %1193 = vmatprep.subr.bf16.mxu0 0
    %1194 = vmatpush1.bf16.msra.mxu0 0
    %1195 = vmatprep.subr.bf16.mxu0 0
    %1196 = vmatpush1.bf16.msra.mxu0 0
    %1197 = vmatprep.subr.bf16.mxu0 0
    %1198 = vmatpush1.bf16.msra.mxu0 %v1181
    %1199 = vmatprep.subr.bf16.mxu0 0
    %1200 = vmatpush2.bf16.msra.mxu0 0
    %1201 = vmatprep.subr.bf16.mxu0 0
    %1202 = vmatpush2.bf16.msra.mxu0 0
    %1203 = vmatprep.subr.bf16.mxu0 0
    %1204 = vmatpush2.bf16.msra.mxu0 0
    %1205 = vmatprep.subr.bf16.mxu0 0
    %1206 = vmatpush2.bf16.msra.mxu0 0
    %1207 = vmatprep.subr.bf16.mxu0 0
    %1208 = vmatpush2.bf16.msra.mxu0 0
    %1209 = vmatprep.subr.bf16.mxu0 0
    %1210 = vmatpush2.bf16.msra.mxu0 0
    %1211 = vmatprep.subr.bf16.mxu0 0
    %1212 = vmatpush2.bf16.msra.mxu0 0
    %1213 = vmatprep.subr.bf16.mxu0 0
    %1214 = vmatpush2.bf16.msra.mxu0 0
    %1215 = vmatprep.mubr.bf16.mxu0 0
    %1216 = vmatmul.mubr.bf16.gmra.mxu0 %v1178
    %v1217 = vpop.f32.mrf.mxu0
    %v1218 = vadd.f32 0.0, %v1217
    %v1219 = vpop.f32.mrf.mxu0
    %v1220 = vpop.f32.mrf.mxu0
    %v1221 = vpop.f32.mrf.mxu0
    %1222 = vdwg.mxu0
    %v1224 = vsel %vm945, %v903, 0
    %v1227 = vsel %vm949, %v935, 0
    %1229 = vmatprep.subr.bf16.mxu0 0
    %1230 = vmatpush1.bf16.msra.mxu0 0
    %1231 = vmatprep.subr.bf16.mxu0 0
    %1232 = vmatpush1.bf16.msra.mxu0 0
    %1233 = vmatprep.subr.bf16.mxu0 0
    %1234 = vmatpush1.bf16.msra.mxu0 0
    %1235 = vmatprep.subr.bf16.mxu0 0
    %1236 = vmatpush1.bf16.msra.mxu0 0
    %1237 = vmatprep.subr.bf16.mxu0 0
    %1238 = vmatpush1.bf16.msra.mxu0 0
    %1239 = vmatprep.subr.bf16.mxu0 0
    %1240 = vmatpush1.bf16.msra.mxu0 0
    %1241 = vmatprep.subr.bf16.mxu0 0
    %1242 = vmatpush1.bf16.msra.mxu0 0
    %1243 = vmatprep.subr.bf16.mxu0 0
    %1244 = vmatpush1.bf16.msra.mxu0 %v1227
    %1245 = vmatprep.subr.bf16.mxu0 0
    %1246 = vmatpush2.bf16.msra.mxu0 0
    %1247 = vmatprep.subr.bf16.mxu0 0
    %1248 = vmatpush2.bf16.msra.mxu0 0
    %1249 = vmatprep.subr.bf16.mxu0 0
    %1250 = vmatpush2.bf16.msra.mxu0 0
    %1251 = vmatprep.subr.bf16.mxu0 0
    %1252 = vmatpush2.bf16.msra.mxu0 0
    %1253 = vmatprep.subr.bf16.mxu0 0
    %1254 = vmatpush2.bf16.msra.mxu0 0
    %1255 = vmatprep.subr.bf16.mxu0 0
    %1256 = vmatpush2.bf16.msra.mxu0 0
    %1257 = vmatprep.subr.bf16.mxu0 0
    %1258 = vmatpush2.bf16.msra.mxu0 0
    %1259 = vmatprep.subr.bf16.mxu0 0
    %1260 = vmatpush2.bf16.msra.mxu0 0
    %1261 = vmatprep.mubr.bf16.mxu0 0
    %1262 = vmatmul.mubr.bf16.gmra.mxu0 %v1224
    %v1263 = vpop.f32.mrf.mxu0
    %v1264 = vadd.f32 0.0, %v1263
    %v1265 = vpop.f32.mrf.mxu0
    %v1266 = vpop.f32.mrf.mxu0
    %v1267 = vpop.f32.mrf.mxu0
    %1268 = vdwg.mxu0
    %v1270 = vsel %vm945, %v904, 0
    %v1273 = vsel %vm949, %v936, 0
    %1275 = vmatprep.subr.bf16.mxu0 0
    %1276 = vmatpush1.bf16.msra.mxu0 0
    %1277 = vmatprep.subr.bf16.mxu0 0
    %1278 = vmatpush1.bf16.msra.mxu0 0
    %1279 = vmatprep.subr.bf16.mxu0 0
    %1280 = vmatpush1.bf16.msra.mxu0 0
    %1281 = vmatprep.subr.bf16.mxu0 0
    %1282 = vmatpush1.bf16.msra.mxu0 0
    %1283 = vmatprep.subr.bf16.mxu0 0
    %1284 = vmatpush1.bf16.msra.mxu0 0
    %1285 = vmatprep.subr.bf16.mxu0 0
    %1286 = vmatpush1.bf16.msra.mxu0 0
    %1287 = vmatprep.subr.bf16.mxu0 0
    %1288 = vmatpush1.bf16.msra.mxu0 0
    %1289 = vmatprep.subr.bf16.mxu0 0
    %1290 = vmatpush1.bf16.msra.mxu0 %v1273
    %1291 = vmatprep.subr.bf16.mxu0 0
    %1292 = vmatpush2.bf16.msra.mxu0 0
    %1293 = vmatprep.subr.bf16.mxu0 0
    %1294 = vmatpush2.bf16.msra.mxu0 0
    %1295 = vmatprep.subr.bf16.mxu0 0
    %1296 = vmatpush2.bf16.msra.mxu0 0
    %1297 = vmatprep.subr.bf16.mxu0 0
    %1298 = vmatpush2.bf16.msra.mxu0 0
    %1299 = vmatprep.subr.bf16.mxu0 0
    %1300 = vmatpush2.bf16.msra.mxu0 0
    %1301 = vmatprep.subr.bf16.mxu0 0
    %1302 = vmatpush2.bf16.msra.mxu0 0
    %1303 = vmatprep.subr.bf16.mxu0 0
    %1304 = vmatpush2.bf16.msra.mxu0 0
    %1305 = vmatprep.subr.bf16.mxu0 0
    %1306 = vmatpush2.bf16.msra.mxu0 0
    %1307 = vmatprep.mubr.bf16.mxu0 0
    %1308 = vmatmul.mubr.bf16.gmra.mxu0 %v1270
    %v1309 = vpop.f32.mrf.mxu0
    %v1310 = vadd.f32 0.0, %v1309
    %v1311 = vpop.f32.mrf.mxu0
    %v1312 = vpop.f32.mrf.mxu0
    %v1313 = vpop.f32.mrf.mxu0
    %1314 = vdwg.mxu0
    %v1316 = vsel %vm945, %v905, 0
    %v1319 = vsel %vm949, %v937, 0
    %1321 = vmatprep.subr.bf16.mxu0 0
    %1322 = vmatpush1.bf16.msra.mxu0 0
    %1323 = vmatprep.subr.bf16.mxu0 0
    %1324 = vmatpush1.bf16.msra.mxu0 0
    %1325 = vmatprep.subr.bf16.mxu0 0
    %1326 = vmatpush1.bf16.msra.mxu0 0
    %1327 = vmatprep.subr.bf16.mxu0 0
    %1328 = vmatpush1.bf16.msra.mxu0 0
    %1329 = vmatprep.subr.bf16.mxu0 0
    %1330 = vmatpush1.bf16.msra.mxu0 0
    %1331 = vmatprep.subr.bf16.mxu0 0
    %1332 = vmatpush1.bf16.msra.mxu0 0
    %1333 = vmatprep.subr.bf16.mxu0 0
    %1334 = vmatpush1.bf16.msra.mxu0 0
    %1335 = vmatprep.subr.bf16.mxu0 0
    %1336 = vmatpush1.bf16.msra.mxu0 %v1319
    %1337 = vmatprep.subr.bf16.mxu0 0
    %1338 = vmatpush2.bf16.msra.mxu0 0
    %1339 = vmatprep.subr.bf16.mxu0 0
    %1340 = vmatpush2.bf16.msra.mxu0 0
    %1341 = vmatprep.subr.bf16.mxu0 0
    %1342 = vmatpush2.bf16.msra.mxu0 0
    %1343 = vmatprep.subr.bf16.mxu0 0
    %1344 = vmatpush2.bf16.msra.mxu0 0
    %1345 = vmatprep.subr.bf16.mxu0 0
    %1346 = vmatpush2.bf16.msra.mxu0 0
    %1347 = vmatprep.subr.bf16.mxu0 0
    %1348 = vmatpush2.bf16.msra.mxu0 0
    %1349 = vmatprep.subr.bf16.mxu0 0
    %1350 = vmatpush2.bf16.msra.mxu0 0
    %1351 = vmatprep.subr.bf16.mxu0 0
    %1352 = vmatpush2.bf16.msra.mxu0 0
    %1353 = vmatprep.mubr.bf16.mxu0 0
    %1354 = vmatmul.mubr.bf16.gmra.mxu0 %v1316
    %v1355 = vpop.f32.mrf.mxu0
    %v1356 = vadd.f32 0.0, %v1355
    %v1357 = vpop.f32.mrf.mxu0
    %v1358 = vpop.f32.mrf.mxu0
    %v1359 = vpop.f32.mrf.mxu0
    %1360 = vdwg.mxu0
    %v1362 = vsel %vm945, %v906, 0
    %v1365 = vsel %vm949, %v938, 0
    %1367 = vmatprep.subr.bf16.mxu0 0
    %1368 = vmatpush1.bf16.msra.mxu0 0
    %1369 = vmatprep.subr.bf16.mxu0 0
    %1370 = vmatpush1.bf16.msra.mxu0 0
    %1371 = vmatprep.subr.bf16.mxu0 0
    %1372 = vmatpush1.bf16.msra.mxu0 0
    %1373 = vmatprep.subr.bf16.mxu0 0
    %1374 = vmatpush1.bf16.msra.mxu0 0
    %1375 = vmatprep.subr.bf16.mxu0 0
    %1376 = vmatpush1.bf16.msra.mxu0 0
    %1377 = vmatprep.subr.bf16.mxu0 0
    %1378 = vmatpush1.bf16.msra.mxu0 0
    %1379 = vmatprep.subr.bf16.mxu0 0
    %1380 = vmatpush1.bf16.msra.mxu0 0
    %1381 = vmatprep.subr.bf16.mxu0 0
    %1382 = vmatpush1.bf16.msra.mxu0 %v1365
    %1383 = vmatprep.subr.bf16.mxu0 0
    %1384 = vmatpush2.bf16.msra.mxu0 0
    %1385 = vmatprep.subr.bf16.mxu0 0
    %1386 = vmatpush2.bf16.msra.mxu0 0
    %1387 = vmatprep.subr.bf16.mxu0 0
    %1388 = vmatpush2.bf16.msra.mxu0 0
    %1389 = vmatprep.subr.bf16.mxu0 0
    %1390 = vmatpush2.bf16.msra.mxu0 0
    %1391 = vmatprep.subr.bf16.mxu0 0
    %1392 = vmatpush2.bf16.msra.mxu0 0
    %1393 = vmatprep.subr.bf16.mxu0 0
    %1394 = vmatpush2.bf16.msra.mxu0 0
    %1395 = vmatprep.subr.bf16.mxu0 0
    %1396 = vmatpush2.bf16.msra.mxu0 0
    %1397 = vmatprep.subr.bf16.mxu0 0
    %1398 = vmatpush2.bf16.msra.mxu0 0
    %1399 = vmatprep.mubr.bf16.mxu0 0
    %1400 = vmatmul.mubr.bf16.gmra.mxu0 %v1362
    %v1401 = vpop.f32.mrf.mxu0
    %v1402 = vadd.f32 0.0, %v1401
    %v1403 = vpop.f32.mrf.mxu0
    %v1404 = vpop.f32.mrf.mxu0
    %v1405 = vpop.f32.mrf.mxu0
    %1406 = vdwg.mxu0
    %v1408 = vsel %vm945, %v907, 0
    %v1411 = vsel %vm949, %v939, 0
    %1413 = vmatprep.subr.bf16.mxu0 0
    %1414 = vmatpush1.bf16.msra.mxu0 0
    %1415 = vmatprep.subr.bf16.mxu0 0
    %1416 = vmatpush1.bf16.msra.mxu0 0
    %1417 = vmatprep.subr.bf16.mxu0 0
    %1418 = vmatpush1.bf16.msra.mxu0 0
    %1419 = vmatprep.subr.bf16.mxu0 0
    %1420 = vmatpush1.bf16.msra.mxu0 0
    %1421 = vmatprep.subr.bf16.mxu0 0
    %1422 = vmatpush1.bf16.msra.mxu0 0
    %1423 = vmatprep.subr.bf16.mxu0 0
    %1424 = vmatpush1.bf16.msra.mxu0 0
    %1425 = vmatprep.subr.bf16.mxu0 0
    %1426 = vmatpush1.bf16.msra.mxu0 0
    %1427 = vmatprep.subr.bf16.mxu0 0
    %1428 = vmatpush1.bf16.msra.mxu0 %v1411
    %1429 = vmatprep.subr.bf16.mxu0 0
    %1430 = vmatpush2.bf16.msra.mxu0 0
    %1431 = vmatprep.subr.bf16.mxu0 0
    %1432 = vmatpush2.bf16.msra.mxu0 0
    %1433 = vmatprep.subr.bf16.mxu0 0
    %1434 = vmatpush2.bf16.msra.mxu0 0
    %1435 = vmatprep.subr.bf16.mxu0 0
    %1436 = vmatpush2.bf16.msra.mxu0 0
    %1437 = vmatprep.subr.bf16.mxu0 0
    %1438 = vmatpush2.bf16.msra.mxu0 0
    %1439 = vmatprep.subr.bf16.mxu0 0
    %1440 = vmatpush2.bf16.msra.mxu0 0
    %1441 = vmatprep.subr.bf16.mxu0 0
    %1442 = vmatpush2.bf16.msra.mxu0 0
    %1443 = vmatprep.subr.bf16.mxu0 0
    %1444 = vmatpush2.bf16.msra.mxu0 0
    %1445 = vmatprep.mubr.bf16.mxu0 0
    %1446 = vmatmul.mubr.bf16.gmra.mxu0 %v1408
    %v1447 = vpop.f32.mrf.mxu0
    %v1448 = vadd.f32 0.0, %v1447
    %v1449 = vpop.f32.mrf.mxu0
    %v1450 = vpop.f32.mrf.mxu0
    %v1451 = vpop.f32.mrf.mxu0
    %1452 = vdwg.mxu0
    %v1454 = vsel %vm945, %v908, 0
    %v1457 = vsel %vm949, %v940, 0
    %1459 = vmatprep.subr.bf16.mxu0 0
    %1460 = vmatpush1.bf16.msra.mxu0 0
    %1461 = vmatprep.subr.bf16.mxu0 0
    %1462 = vmatpush1.bf16.msra.mxu0 0
    %1463 = vmatprep.subr.bf16.mxu0 0
    %1464 = vmatpush1.bf16.msra.mxu0 0
    %1465 = vmatprep.subr.bf16.mxu0 0
    %1466 = vmatpush1.bf16.msra.mxu0 0
    %1467 = vmatprep.subr.bf16.mxu0 0
    %1468 = vmatpush1.bf16.msra.mxu0 0
    %1469 = vmatprep.subr.bf16.mxu0 0
    %1470 = vmatpush1.bf16.msra.mxu0 0
    %1471 = vmatprep.subr.bf16.mxu0 0
    %1472 = vmatpush1.bf16.msra.mxu0 0
    %1473 = vmatprep.subr.bf16.mxu0 0
    %1474 = vmatpush1.bf16.msra.mxu0 %v1457
    %1475 = vmatprep.subr.bf16.mxu0 0
    %1476 = vmatpush2.bf16.msra.mxu0 0
    %1477 = vmatprep.subr.bf16.mxu0 0
    %1478 = vmatpush2.bf16.msra.mxu0 0
    %1479 = vmatprep.subr.bf16.mxu0 0
    %1480 = vmatpush2.bf16.msra.mxu0 0
    %1481 = vmatprep.subr.bf16.mxu0 0
    %1482 = vmatpush2.bf16.msra.mxu0 0
    %1483 = vmatprep.subr.bf16.mxu0 0
    %1484 = vmatpush2.bf16.msra.mxu0 0
    %1485 = vmatprep.subr.bf16.mxu0 0
    %1486 = vmatpush2.bf16.msra.mxu0 0
    %1487 = vmatprep.subr.bf16.mxu0 0
    %1488 = vmatpush2.bf16.msra.mxu0 0
    %1489 = vmatprep.subr.bf16.mxu0 0
    %1490 = vmatpush2.bf16.msra.mxu0 0
    %1491 = vmatprep.mubr.bf16.mxu0 0
    %1492 = vmatmul.mubr.bf16.gmra.mxu0 %v1454
    %v1493 = vpop.f32.mrf.mxu0
    %v1494 = vadd.f32 0.0, %v1493
    %v1495 = vpop.f32.mrf.mxu0
    %v1496 = vpop.f32.mrf.mxu0
    %v1497 = vpop.f32.mrf.mxu0
    %1498 = vdwg.mxu0
    %v1500 = vsel %vm945, %v909, 0
    %v1503 = vsel %vm949, %v941, 0
    %1505 = vmatprep.subr.bf16.mxu0 0
    %1506 = vmatpush1.bf16.msra.mxu0 0
    %1507 = vmatprep.subr.bf16.mxu0 0
    %1508 = vmatpush1.bf16.msra.mxu0 0
    %1509 = vmatprep.subr.bf16.mxu0 0
    %1510 = vmatpush1.bf16.msra.mxu0 0
    %1511 = vmatprep.subr.bf16.mxu0 0
    %1512 = vmatpush1.bf16.msra.mxu0 0
    %1513 = vmatprep.subr.bf16.mxu0 0
    %1514 = vmatpush1.bf16.msra.mxu0 0
    %1515 = vmatprep.subr.bf16.mxu0 0
    %1516 = vmatpush1.bf16.msra.mxu0 0
    %1517 = vmatprep.subr.bf16.mxu0 0
    %1518 = vmatpush1.bf16.msra.mxu0 0
    %1519 = vmatprep.subr.bf16.mxu0 0
    %1520 = vmatpush1.bf16.msra.mxu0 %v1503
    %1521 = vmatprep.subr.bf16.mxu0 0
    %1522 = vmatpush2.bf16.msra.mxu0 0
    %1523 = vmatprep.subr.bf16.mxu0 0
    %1524 = vmatpush2.bf16.msra.mxu0 0
    %1525 = vmatprep.subr.bf16.mxu0 0
    %1526 = vmatpush2.bf16.msra.mxu0 0
    %1527 = vmatprep.subr.bf16.mxu0 0
    %1528 = vmatpush2.bf16.msra.mxu0 0
    %1529 = vmatprep.subr.bf16.mxu0 0
    %1530 = vmatpush2.bf16.msra.mxu0 0
    %1531 = vmatprep.subr.bf16.mxu0 0
    %1532 = vmatpush2.bf16.msra.mxu0 0
    %1533 = vmatprep.subr.bf16.mxu0 0
    %1534 = vmatpush2.bf16.msra.mxu0 0
    %1535 = vmatprep.subr.bf16.mxu0 0
    %1536 = vmatpush2.bf16.msra.mxu0 0
    %1537 = vmatprep.mubr.bf16.mxu0 0
    %1538 = vmatmul.mubr.bf16.gmra.mxu0 %v1500
    %v1539 = vpop.f32.mrf.mxu0
    %v1540 = vadd.f32 0.0, %v1539
    %v1541 = vpop.f32.mrf.mxu0
    %v1542 = vpop.f32.mrf.mxu0
    %v1543 = vpop.f32.mrf.mxu0
    %1544 = vdwg.mxu0
    %v1546 = vsel %vm945, %v910, 0
    %v1549 = vsel %vm949, %v942, 0
    %1551 = vmatprep.subr.bf16.mxu0 0
    %1552 = vmatpush1.bf16.msra.mxu0 0
    %1553 = vmatprep.subr.bf16.mxu0 0
    %1554 = vmatpush1.bf16.msra.mxu0 0
    %1555 = vmatprep.subr.bf16.mxu0 0
    %1556 = vmatpush1.bf16.msra.mxu0 0
    %1557 = vmatprep.subr.bf16.mxu0 0
    %1558 = vmatpush1.bf16.msra.mxu0 0
    %1559 = vmatprep.subr.bf16.mxu0 0
    %1560 = vmatpush1.bf16.msra.mxu0 0
    %1561 = vmatprep.subr.bf16.mxu0 0
    %1562 = vmatpush1.bf16.msra.mxu0 0
    %1563 = vmatprep.subr.bf16.mxu0 0
    %1564 = vmatpush1.bf16.msra.mxu0 0
    %1565 = vmatprep.subr.bf16.mxu0 0
    %1566 = vmatpush1.bf16.msra.mxu0 %v1549
    %1567 = vmatprep.subr.bf16.mxu0 0
    %1568 = vmatpush2.bf16.msra.mxu0 0
    %1569 = vmatprep.subr.bf16.mxu0 0
    %1570 = vmatpush2.bf16.msra.mxu0 0
    %1571 = vmatprep.subr.bf16.mxu0 0
    %1572 = vmatpush2.bf16.msra.mxu0 0
    %1573 = vmatprep.subr.bf16.mxu0 0
    %1574 = vmatpush2.bf16.msra.mxu0 0
    %1575 = vmatprep.subr.bf16.mxu0 0
    %1576 = vmatpush2.bf16.msra.mxu0 0
    %1577 = vmatprep.subr.bf16.mxu0 0
    %1578 = vmatpush2.bf16.msra.mxu0 0
    %1579 = vmatprep.subr.bf16.mxu0 0
    %1580 = vmatpush2.bf16.msra.mxu0 0
    %1581 = vmatprep.subr.bf16.mxu0 0
    %1582 = vmatpush2.bf16.msra.mxu0 0
    %1583 = vmatprep.mubr.bf16.mxu0 0
    %1584 = vmatmul.mubr.bf16.gmra.mxu0 %v1546
    %v1585 = vpop.f32.mrf.mxu0
    %v1586 = vadd.f32 0.0, %v1585
    %v1587 = vpop.f32.mrf.mxu0
    %v1588 = vpop.f32.mrf.mxu0
    %v1589 = vpop.f32.mrf.mxu0
    %1590 = vdwg.mxu0
    %v1592 = vsel %vm945, %v911, 0
    %v1595 = vsel %vm949, %v943, 0
    %1597 = vmatprep.subr.bf16.mxu0 0
    %1598 = vmatpush1.bf16.msra.mxu0 0
    %1599 = vmatprep.subr.bf16.mxu0 0
    %1600 = vmatpush1.bf16.msra.mxu0 0
    %1601 = vmatprep.subr.bf16.mxu0 0
    %1602 = vmatpush1.bf16.msra.mxu0 0
    %1603 = vmatprep.subr.bf16.mxu0 0
    %1604 = vmatpush1.bf16.msra.mxu0 0
    %1605 = vmatprep.subr.bf16.mxu0 0
    %1606 = vmatpush1.bf16.msra.mxu0 0
    %1607 = vmatprep.subr.bf16.mxu0 0
    %1608 = vmatpush1.bf16.msra.mxu0 0
    %1609 = vmatprep.subr.bf16.mxu0 0
    %1610 = vmatpush1.bf16.msra.mxu0 0
    %1611 = vmatprep.subr.bf16.mxu0 0
    %1612 = vmatpush1.bf16.msra.mxu0 %v1595
    %1613 = vmatprep.subr.bf16.mxu0 0
    %1614 = vmatpush2.bf16.msra.mxu0 0
    %1615 = vmatprep.subr.bf16.mxu0 0
    %1616 = vmatpush2.bf16.msra.mxu0 0
    %1617 = vmatprep.subr.bf16.mxu0 0
    %1618 = vmatpush2.bf16.msra.mxu0 0
    %1619 = vmatprep.subr.bf16.mxu0 0
    %1620 = vmatpush2.bf16.msra.mxu0 0
    %1621 = vmatprep.subr.bf16.mxu0 0
    %1622 = vmatpush2.bf16.msra.mxu0 0
    %1623 = vmatprep.subr.bf16.mxu0 0
    %1624 = vmatpush2.bf16.msra.mxu0 0
    %1625 = vmatprep.subr.bf16.mxu0 0
    %1626 = vmatpush2.bf16.msra.mxu0 0
    %1627 = vmatprep.subr.bf16.mxu0 0
    %1628 = vmatpush2.bf16.msra.mxu0 0
    %1629 = vmatprep.mubr.bf16.mxu0 0
    %1630 = vmatmul.mubr.bf16.gmra.mxu0 %v1592
    %v1631 = vpop.f32.mrf.mxu0
    %v1632 = vadd.f32 0.0, %v1631
    %v1633 = vpop.f32.mrf.mxu0
    %v1634 = vpop.f32.mrf.mxu0
    %v1635 = vpop.f32.mrf.mxu0
    %1636 = vdwg.mxu0
    %v1638 = vsel %vm945, %v912, 0
    %v1641 = vsel %vm949, %v944, 0
    %1643 = vmatprep.subr.bf16.mxu0 0
    %1644 = vmatpush1.bf16.msra.mxu0 0
    %1645 = vmatprep.subr.bf16.mxu0 0
    %1646 = vmatpush1.bf16.msra.mxu0 0
    %1647 = vmatprep.subr.bf16.mxu0 0
    %1648 = vmatpush1.bf16.msra.mxu0 0
    %1649 = vmatprep.subr.bf16.mxu0 0
    %1650 = vmatpush1.bf16.msra.mxu0 0
    %1651 = vmatprep.subr.bf16.mxu0 0
    %1652 = vmatpush1.bf16.msra.mxu0 0
    %1653 = vmatprep.subr.bf16.mxu0 0
    %1654 = vmatpush1.bf16.msra.mxu0 0
    %1655 = vmatprep.subr.bf16.mxu0 0
    %1656 = vmatpush1.bf16.msra.mxu0 0
    %1657 = vmatprep.subr.bf16.mxu0 0
    %1658 = vmatpush1.bf16.msra.mxu0 %v1641
    %1659 = vmatprep.subr.bf16.mxu0 0
    %1660 = vmatpush2.bf16.msra.mxu0 0
    %1661 = vmatprep.subr.bf16.mxu0 0
    %1662 = vmatpush2.bf16.msra.mxu0 0
    %1663 = vmatprep.subr.bf16.mxu0 0
    %1664 = vmatpush2.bf16.msra.mxu0 0
    %1665 = vmatprep.subr.bf16.mxu0 0
    %1666 = vmatpush2.bf16.msra.mxu0 0
    %1667 = vmatprep.subr.bf16.mxu0 0
    %1668 = vmatpush2.bf16.msra.mxu0 0
    %1669 = vmatprep.subr.bf16.mxu0 0
    %1670 = vmatpush2.bf16.msra.mxu0 0
    %1671 = vmatprep.subr.bf16.mxu0 0
    %1672 = vmatpush2.bf16.msra.mxu0 0
    %1673 = vmatprep.subr.bf16.mxu0 0
    %1674 = vmatpush2.bf16.msra.mxu0 0
    %1675 = vmatprep.mubr.bf16.mxu0 0
    %1676 = vmatmul.mubr.bf16.gmra.mxu0 %v1638
    %v1677 = vpop.f32.mrf.mxu0
    %v1678 = vadd.f32 0.0, %v1677
    %v1679 = vpop.f32.mrf.mxu0
    %v1680 = vpop.f32.mrf.mxu0
    %v1681 = vpop.f32.mrf.mxu0
    %1682 = vdwg.mxu0
    %v1683 = vadd.f32 %v913, %v988
    %v1684 = vadd.f32 %v914, %v1034
    %v1685 = vadd.f32 %v915, %v1080
    %v1686 = vadd.f32 %v916, %v1126
    %v1687 = vadd.f32 %v917, %v1172
    %v1688 = vadd.f32 %v918, %v1218
    %v1689 = vadd.f32 %v919, %v1264
    %v1690 = vadd.f32 %v920, %v1310
    %v1691 = vadd.f32 %v921, %v1356
    %v1692 = vadd.f32 %v922, %v1402
    %v1693 = vadd.f32 %v923, %v1448
    %v1694 = vadd.f32 %v924, %v1494
    %v1695 = vadd.f32 %v925, %v1540
    %v1696 = vadd.f32 %v926, %v1586
    %v1697 = vadd.f32 %v927, %v1632
    %v1698 = vadd.f32 %v928, %v1678
    %vm1699 = vcmask 254976
    %1700 = vst.msk [vmem:[#allocation2] sm:$0x3] %vm1699, %v1683
    %1701 = vst.msk [vmem:[#allocation2 + $0x2] sm:$0x3] %vm1699, %v1684
    %1702 = vst.msk [vmem:[#allocation2 + $0x4] sm:$0x3] %vm1699, %v1685
    %1703 = vst.msk [vmem:[#allocation2 + $0x6] sm:$0x3] %vm1699, %v1686
    %1704 = vst.msk [vmem:[#allocation2 + $0x8] sm:$0x3] %vm1699, %v1687
    %1705 = vst.msk [vmem:[#allocation2 + $0xa] sm:$0x3] %vm1699, %v1688
    %1706 = vst.msk [vmem:[#allocation2 + $0xc] sm:$0x3] %vm1699, %v1689
    %1707 = vst.msk [vmem:[#allocation2 + $0xe] sm:$0x3] %vm1699, %v1690
    %1708 = vst.msk [vmem:[#allocation2 + $0x10] sm:$0x3] %vm1699, %v1691
    %1709 = vst.msk [vmem:[#allocation2 + $0x12] sm:$0x3] %vm1699, %v1692
    %1710 = vst.msk [vmem:[#allocation2 + $0x14] sm:$0x3] %vm1699, %v1693
    %1711 = vst.msk [vmem:[#allocation2 + $0x16] sm:$0x3] %vm1699, %v1694
    %1712 = vst.msk [vmem:[#allocation2 + $0x18] sm:$0x3] %vm1699, %v1695
    %1713 = vst.msk [vmem:[#allocation2 + $0x1a] sm:$0x3] %vm1699, %v1696
    %1714 = vst.msk [vmem:[#allocation2 + $0x1c] sm:$0x3] %vm1699, %v1697
    %1715 = vst.msk [vmem:[#allocation2 + $0x1e] sm:$0x3] %vm1699, %v1698
    // Predicated region
    $region42: #{tpu_custom_call.1} parent=1 // pred_check
      %p1716 = pneg %p45
    $region43: #{tpu_custom_call.1} parent=1 // pred_check_branch
      %1718 = sbr.rel (%p1716) target = $region45
    $region44: #{tpu_custom_call.1} parent=1 // pred_region
      %v1719 = vld [vmem:[#allocation2] sm:$0x1]
      %v1720 = vld [vmem:[#allocation2 + $0x2] sm:$0x1]
      %v1721 = vld [vmem:[#allocation2 + $0x4] sm:$0x1]
      %v1722 = vld [vmem:[#allocation2 + $0x6] sm:$0x1]
      %v1723 = vld [vmem:[#allocation2 + $0x8] sm:$0x1]
      %v1724 = vld [vmem:[#allocation2 + $0xa] sm:$0x1]
      %v1725 = vld [vmem:[#allocation2 + $0xc] sm:$0x1]
      %v1726 = vld [vmem:[#allocation2 + $0xe] sm:$0x1]
      %v1727 = vld [vmem:[#allocation2 + $0x10] sm:$0x1]
      %v1728 = vld [vmem:[#allocation2 + $0x12] sm:$0x1]
      %v1729 = vld [vmem:[#allocation2 + $0x14] sm:$0x1]
      %v1730 = vld [vmem:[#allocation2 + $0x16] sm:$0x1]
      %v1731 = vld [vmem:[#allocation2 + $0x18] sm:$0x1]
      %v1732 = vld [vmem:[#allocation2 + $0x1a] sm:$0x1]
      %v1733 = vld [vmem:[#allocation2 + $0x1c] sm:$0x1]
      %v1734 = vld [vmem:[#allocation2 + $0x1e] sm:$0x1]
      %v1735 = vld [vmem:[#allocation2 + $0x1] sm:$0x1]
      %v1736 = vld [vmem:[#allocation2 + $0x3] sm:$0x1]
      %v1737 = vld [vmem:[#allocation2 + $0x5] sm:$0x1]
      %v1738 = vld [vmem:[#allocation2 + $0x7] sm:$0x1]
      %v1739 = vld [vmem:[#allocation2 + $0x9] sm:$0x1]
      %v1740 = vld [vmem:[#allocation2 + $0xb] sm:$0x1]
      %v1741 = vld [vmem:[#allocation2 + $0xd] sm:$0x1]
      %v1742 = vld [vmem:[#allocation2 + $0xf] sm:$0x1]
      %v1743 = vld [vmem:[#allocation2 + $0x11] sm:$0x1]
      %v1744 = vld [vmem:[#allocation2 + $0x13] sm:$0x1]
      %v1745 = vld [vmem:[#allocation2 + $0x15] sm:$0x1]
      %v1746 = vld [vmem:[#allocation2 + $0x17] sm:$0x1]
      %v1747 = vld [vmem:[#allocation2 + $0x19] sm:$0x1]
      %v1748 = vld [vmem:[#allocation2 + $0x1b] sm:$0x1]
      %v1749 = vld [vmem:[#allocation2 + $0x1d] sm:$0x1]
      %v1750 = vld [vmem:[#allocation2 + $0x1f] sm:$0x1]
      %v1751 = vld [vmem:[%s1] sm:$0xff]
      %v1752 = vld [vmem:[%s1 + $0x8] sm:$0xff]
      %v1753 = vpack.c.bf16 %v1752, %v1751
      %v1754 = vld [vmem:[#allocation3] sm:$0xf]
      %v1755 = vld [vmem:[#allocation3 + $0x4] sm:$0xf]
      %v1756 = vld [vmem:[#allocation3 + $0x8] sm:$0xf]
      %v1757 = vld [vmem:[#allocation3 + $0xc] sm:$0xf]
      %v1758 = vpack.c.bf16 %v1719, %v1719
      %v1759 = vpack.c.bf16 %v1720, %v1720
      %v1760 = vpack.c.bf16 %v1721, %v1721
      %v1761 = vpack.c.bf16 %v1722, %v1722
      %v1762 = vpack.c.bf16 %v1723, %v1723
      %v1763 = vpack.c.bf16 %v1724, %v1724
      %v1764 = vpack.c.bf16 %v1725, %v1725
      %v1765 = vpack.c.bf16 %v1726, %v1726
      %v1766 = vpack.c.bf16 %v1727, %v1727
      %v1767 = vpack.c.bf16 %v1728, %v1728
      %v1768 = vpack.c.bf16 %v1729, %v1729
      %v1769 = vpack.c.bf16 %v1730, %v1730
      %v1770 = vpack.c.bf16 %v1731, %v1731
      %v1771 = vpack.c.bf16 %v1732, %v1732
      %v1772 = vpack.c.bf16 %v1733, %v1733
      %v1773 = vpack.c.bf16 %v1734, %v1734
      %s1774 = scalar_lea.vmem [#allocation3], 16
      %v1775 = vld [vmem:[%s1774] sm:$0xf]
      %v1776 = vld [vmem:[%s1774 + $0x4] sm:$0xf]
      %v1777 = vld [vmem:[%s1774 + $0x8] sm:$0xf]
      %v1778 = vld [vmem:[%s1774 + $0xc] sm:$0xf]
      %v1795 = vunpack.c.l.b16 %v1758
      %v1796 = vunpack.c.l.b16 %v1759
      %v1797 = vunpack.c.l.b16 %v1760
      %v1798 = vunpack.c.l.b16 %v1761
      %v1799 = vunpack.c.l.b16 %v1762
      %v1800 = vunpack.c.l.b16 %v1763
      %v1801 = vunpack.c.l.b16 %v1764
      %v1802 = vunpack.c.l.b16 %v1765
      %v1803 = vunpack.c.l.b16 %v1766
      %v1804 = vunpack.c.l.b16 %v1767
      %v1805 = vunpack.c.l.b16 %v1768
      %v1806 = vunpack.c.l.b16 %v1769
      %v1807 = vunpack.c.l.b16 %v1770
      %v1808 = vunpack.c.l.b16 %v1771
      %v1809 = vunpack.c.l.b16 %v1772
      %v1810 = vunpack.c.l.b16 %v1773
      %v1811 = vrot.slane %v1796, 7
      %vm1812 = vcmask 1041409
      %v1813 = vsel %vm1812, %v1811, %v1795
      %v1814 = vrot.slane %v1797, 6
      %vm1815 = vcmask 1042434
      %v1816 = vsel %vm1815, %v1814, %v1813
      %v1817 = vrot.slane %v1798, 5
      %vm1818 = vcmask 1043459
      %v1819 = vsel %vm1818, %v1817, %v1816
      %v1820 = vrot.slane %v1799, 4
      %vm1821 = vcmask 1044484
      %v1822 = vsel %vm1821, %v1820, %v1819
      %v1823 = vrot.slane %v1800, 3
      %vm1824 = vcmask 1045509
      %v1825 = vsel %vm1824, %v1823, %v1822
      %v1826 = vrot.slane %v1801, 2
      %vm1827 = vcmask 1046534
      %v1828 = vsel %vm1827, %v1826, %v1825
      %v1829 = vrot.slane %v1802, 1
      %vm1830 = vcmask 1047559
      %v1831 = vsel %vm1830, %v1829, %v1828
      %v1832 = vrot.slane %v1804, 7
      %v1833 = vsel %vm1812, %v1832, %v1803
      %v1834 = vrot.slane %v1805, 6
      %v1835 = vsel %vm1815, %v1834, %v1833
      %v1836 = vrot.slane %v1806, 5
      %v1837 = vsel %vm1818, %v1836, %v1835
      %v1838 = vrot.slane %v1807, 4
      %v1839 = vsel %vm1821, %v1838, %v1837
      %v1840 = vrot.slane %v1808, 3
      %v1841 = vsel %vm1824, %v1840, %v1839
      %v1842 = vrot.slane %v1809, 2
      %v1843 = vsel %vm1827, %v1842, %v1841
      %v1844 = vrot.slane %v1810, 1
      %v1845 = vsel %vm1830, %v1844, %v1843
      %v1846 = vpack.c.b16 %v1845, %v1831
      %v1851 = vunpack.c.l.b16 %v1775
      %v1852 = vunpack.c.l.b16 %v1776
      %v1853 = vunpack.c.l.b16 %v1777
      %v1854 = vunpack.c.l.b16 %v1778
      %v1855 = vpack.c.b16 %v1852, %v1851
      %v1856 = vpack.c.b16 %v1854, %v1853
      %vm1859 = vcmask 261120
      %v1861 = vsel %vm1859, %v1846, 0
      %1863 = vmatprep.subr.bf16.mxu0 0
      %1864 = vmatpush1.bf16.msra.mxu0 0
      %1865 = vmatprep.subr.bf16.mxu0 0
      %1866 = vmatpush1.bf16.msra.mxu0 0
      %1867 = vmatprep.subr.bf16.mxu0 0
      %1868 = vmatpush1.bf16.msra.mxu0 0
      %1869 = vmatprep.subr.bf16.mxu0 0
      %1870 = vmatpush1.bf16.msra.mxu0 0
      %1871 = vmatprep.subr.bf16.mxu0 0
      %1872 = vmatpush1.bf16.msra.mxu0 0
      %1873 = vmatprep.subr.bf16.mxu0 0
      %1874 = vmatpush1.bf16.msra.mxu0 0
      %1875 = vmatprep.subr.bf16.mxu0 0
      %1876 = vmatpush1.bf16.msra.mxu0 %v1856
      %1877 = vmatprep.subr.bf16.mxu0 0
      %1878 = vmatpush1.bf16.msra.mxu0 %v1855
      %1879 = vmatprep.subr.bf16.mxu0 0
      %1880 = vmatpush2.bf16.msra.mxu0 0
      %1881 = vmatprep.subr.bf16.mxu0 0
      %1882 = vmatpush2.bf16.msra.mxu0 0
      %1883 = vmatprep.subr.bf16.mxu0 0
      %1884 = vmatpush2.bf16.msra.mxu0 0
      %1885 = vmatprep.subr.bf16.mxu0 0
      %1886 = vmatpush2.bf16.msra.mxu0 0
      %1887 = vmatprep.subr.bf16.mxu0 0
      %1888 = vmatpush2.bf16.msra.mxu0 0
      %1889 = vmatprep.subr.bf16.mxu0 0
      %1890 = vmatpush2.bf16.msra.mxu0 0
      %1891 = vmatprep.subr.bf16.mxu0 0
      %1892 = vmatpush2.bf16.msra.mxu0 0
      %1893 = vmatprep.subr.bf16.mxu0 0
      %1894 = vmatpush2.bf16.msra.mxu0 0
      %1895 = vmatprep.mubr.bf16.mxu0 0
      %1896 = vmatmul.mubr.bf16.gmra.mxu0 %v1861
      %v1897 = vpop.f32.mrf.mxu0
      %v1898 = vadd.f32 0.0, %v1897
      %v1899 = vpop.f32.mrf.mxu0
      %v1900 = vpop.f32.mrf.mxu0
      %v1901 = vadd.f32 0.0, %v1900
      %v1902 = vpop.f32.mrf.mxu0
      %1903 = vdwg.mxu0
      %v1908 = vunpack.c.l.b16 %v1754
      %v1909 = vunpack.c.l.b16 %v1755
      %v1910 = vunpack.c.l.b16 %v1756
      %v1911 = vunpack.c.l.b16 %v1757
      %v1912 = vpack.c.b16 %v1909, %v1908
      %v1913 = vpack.c.b16 %v1911, %v1910
      %v1917 = vsel %vm1859, %v1753, 0
      %1919 = vmatprep.subr.bf16.mxu0 0
      %1920 = vmatpush1.bf16.msra.mxu0 0
      %1921 = vmatprep.subr.bf16.mxu0 0
      %1922 = vmatpush1.bf16.msra.mxu0 0
      %1923 = vmatprep.subr.bf16.mxu0 0
      %1924 = vmatpush1.bf16.msra.mxu0 0
      %1925 = vmatprep.subr.bf16.mxu0 0
      %1926 = vmatpush1.bf16.msra.mxu0 0
      %1927 = vmatprep.subr.bf16.mxu0 0
      %1928 = vmatpush1.bf16.msra.mxu0 0
      %1929 = vmatprep.subr.bf16.mxu0 0
      %1930 = vmatpush1.bf16.msra.mxu0 0
      %1931 = vmatprep.subr.bf16.mxu0 0
      %1932 = vmatpush1.bf16.msra.mxu0 %v1913
      %1933 = vmatprep.subr.bf16.mxu0 0
      %1934 = vmatpush1.bf16.msra.mxu0 %v1912
      %1935 = vmatprep.subr.bf16.mxu0 0
      %1936 = vmatpush2.bf16.msra.mxu0 0
      %1937 = vmatprep.subr.bf16.mxu0 0
      %1938 = vmatpush2.bf16.msra.mxu0 0
      %1939 = vmatprep.subr.bf16.mxu0 0
      %1940 = vmatpush2.bf16.msra.mxu0 0
      %1941 = vmatprep.subr.bf16.mxu0 0
      %1942 = vmatpush2.bf16.msra.mxu0 0
      %1943 = vmatprep.subr.bf16.mxu0 0
      %1944 = vmatpush2.bf16.msra.mxu0 0
      %1945 = vmatprep.subr.bf16.mxu0 0
      %1946 = vmatpush2.bf16.msra.mxu0 0
      %1947 = vmatprep.subr.bf16.mxu0 0
      %1948 = vmatpush2.bf16.msra.mxu0 0
      %1949 = vmatprep.subr.bf16.mxu0 0
      %1950 = vmatpush2.bf16.msra.mxu0 0
      %1951 = vmatprep.mubr.bf16.mxu0 0
      %1952 = vmatmul.mubr.bf16.gmra.mxu0 %v1917
      %v1953 = vpop.f32.mrf.mxu0
      %v1954 = vadd.f32 %v1898, %v1953
      %v1955 = vpop.f32.mrf.mxu0
      %v1956 = vpop.f32.mrf.mxu0
      %v1957 = vadd.f32 %v1901, %v1956
      %v1958 = vpop.f32.mrf.mxu0
      %1959 = vdwg.mxu0
      %v1960 = vpack.c.bf16 %v1735, %v1735
      %v1961 = vpack.c.bf16 %v1736, %v1736
      %v1962 = vpack.c.bf16 %v1737, %v1737
      %v1963 = vpack.c.bf16 %v1738, %v1738
      %v1964 = vpack.c.bf16 %v1739, %v1739
      %v1965 = vpack.c.bf16 %v1740, %v1740
      %v1966 = vpack.c.bf16 %v1741, %v1741
      %v1967 = vpack.c.bf16 %v1742, %v1742
      %v1968 = vpack.c.bf16 %v1743, %v1743
      %v1969 = vpack.c.bf16 %v1744, %v1744
      %v1970 = vpack.c.bf16 %v1745, %v1745
      %v1971 = vpack.c.bf16 %v1746, %v1746
      %v1972 = vpack.c.bf16 %v1747, %v1747
      %v1973 = vpack.c.bf16 %v1748, %v1748
      %v1974 = vpack.c.bf16 %v1749, %v1749
      %v1975 = vpack.c.bf16 %v1750, %v1750
      %s1976 = scalar_lea.vmem [#allocation3], 32
      %v1977 = vld [vmem:[%s1976] sm:$0xf]
      %v1978 = vld [vmem:[%s1976 + $0x4] sm:$0xf]
      %v1979 = vld [vmem:[%s1976 + $0x8] sm:$0xf]
      %v1980 = vld [vmem:[%s1976 + $0xc] sm:$0xf]
      %v1997 = vunpack.c.l.b16 %v1960
      %v1998 = vunpack.c.l.b16 %v1961
      %v1999 = vunpack.c.l.b16 %v1962
      %v2000 = vunpack.c.l.b16 %v1963
      %v2001 = vunpack.c.l.b16 %v1964
      %v2002 = vunpack.c.l.b16 %v1965
      %v2003 = vunpack.c.l.b16 %v1966
      %v2004 = vunpack.c.l.b16 %v1967
      %v2005 = vunpack.c.l.b16 %v1968
      %v2006 = vunpack.c.l.b16 %v1969
      %v2007 = vunpack.c.l.b16 %v1970
      %v2008 = vunpack.c.l.b16 %v1971
      %v2009 = vunpack.c.l.b16 %v1972
      %v2010 = vunpack.c.l.b16 %v1973
      %v2011 = vunpack.c.l.b16 %v1974
      %v2012 = vunpack.c.l.b16 %v1975
      %v2013 = vrot.slane %v1998, 7
      %v2014 = vsel %vm1812, %v2013, %v1997
      %v2015 = vrot.slane %v1999, 6
      %v2016 = vsel %vm1815, %v2015, %v2014
      %v2017 = vrot.slane %v2000, 5
      %v2018 = vsel %vm1818, %v2017, %v2016
      %v2019 = vrot.slane %v2001, 4
      %v2020 = vsel %vm1821, %v2019, %v2018
      %v2021 = vrot.slane %v2002, 3
      %v2022 = vsel %vm1824, %v2021, %v2020
      %v2023 = vrot.slane %v2003, 2
      %v2024 = vsel %vm1827, %v2023, %v2022
      %v2025 = vrot.slane %v2004, 1
      %v2026 = vsel %vm1830, %v2025, %v2024
      %v2027 = vrot.slane %v2006, 7
      %v2028 = vsel %vm1812, %v2027, %v2005
      %v2029 = vrot.slane %v2007, 6
      %v2030 = vsel %vm1815, %v2029, %v2028
      %v2031 = vrot.slane %v2008, 5
      %v2032 = vsel %vm1818, %v2031, %v2030
      %v2033 = vrot.slane %v2009, 4
      %v2034 = vsel %vm1821, %v2033, %v2032
      %v2035 = vrot.slane %v2010, 3
      %v2036 = vsel %vm1824, %v2035, %v2034
      %v2037 = vrot.slane %v2011, 2
      %v2038 = vsel %vm1827, %v2037, %v2036
      %v2039 = vrot.slane %v2012, 1
      %v2040 = vsel %vm1830, %v2039, %v2038
      %v2041 = vpack.c.b16 %v2040, %v2026
      %v2046 = vunpack.c.l.b16 %v1977
      %v2047 = vunpack.c.l.b16 %v1978
      %v2048 = vunpack.c.l.b16 %v1979
      %v2049 = vunpack.c.l.b16 %v1980
      %v2050 = vpack.c.b16 %v2047, %v2046
      %v2051 = vpack.c.b16 %v2049, %v2048
      %v2055 = vsel %vm1859, %v2041, 0
      %2057 = vmatprep.subr.bf16.mxu0 0
      %2058 = vmatpush1.bf16.msra.mxu0 0
      %2059 = vmatprep.subr.bf16.mxu0 0
      %2060 = vmatpush1.bf16.msra.mxu0 0
      %2061 = vmatprep.subr.bf16.mxu0 0
      %2062 = vmatpush1.bf16.msra.mxu0 0
      %2063 = vmatprep.subr.bf16.mxu0 0
      %2064 = vmatpush1.bf16.msra.mxu0 0
      %2065 = vmatprep.subr.bf16.mxu0 0
      %2066 = vmatpush1.bf16.msra.mxu0 0
      %2067 = vmatprep.subr.bf16.mxu0 0
      %2068 = vmatpush1.bf16.msra.mxu0 0
      %2069 = vmatprep.subr.bf16.mxu0 0
      %2070 = vmatpush1.bf16.msra.mxu0 %v2051
      %2071 = vmatprep.subr.bf16.mxu0 0
      %2072 = vmatpush1.bf16.msra.mxu0 %v2050
      %2073 = vmatprep.subr.bf16.mxu0 0
      %2074 = vmatpush2.bf16.msra.mxu0 0
      %2075 = vmatprep.subr.bf16.mxu0 0
      %2076 = vmatpush2.bf16.msra.mxu0 0
      %2077 = vmatprep.subr.bf16.mxu0 0
      %2078 = vmatpush2.bf16.msra.mxu0 0
      %2079 = vmatprep.subr.bf16.mxu0 0
      %2080 = vmatpush2.bf16.msra.mxu0 0
      %2081 = vmatprep.subr.bf16.mxu0 0
      %2082 = vmatpush2.bf16.msra.mxu0 0
      %2083 = vmatprep.subr.bf16.mxu0 0
      %2084 = vmatpush2.bf16.msra.mxu0 0
      %2085 = vmatprep.subr.bf16.mxu0 0
      %2086 = vmatpush2.bf16.msra.mxu0 0
      %2087 = vmatprep.subr.bf16.mxu0 0
      %2088 = vmatpush2.bf16.msra.mxu0 0
      %2089 = vmatprep.mubr.bf16.mxu0 0
      %2090 = vmatmul.mubr.bf16.gmra.mxu0 %v2055
      %v2091 = vpop.f32.mrf.mxu0
      %v2092 = vadd.f32 0.0, %v2091
      %v2093 = vpop.f32.mrf.mxu0
      %v2094 = vpop.f32.mrf.mxu0
      %v2095 = vadd.f32 0.0, %v2094
      %v2096 = vpop.f32.mrf.mxu0
      %2097 = vdwg.mxu0
      %v2098 = vadd.f32 %v1954, %v2092
      %v2099 = vadd.f32 %v1957, %v2095
      %v2100 = vld [vmem:[%s7] sm:$0x1]
      %v2102 = vlaneseq
      %v2103 = vshrl.u32 %v2102, 7
      %v2104 = vsub.s32 0, %v2103
      %v2105 = vrot.slane %v2100, %v2104
      %v2107 = vadd.f32 %v2098, %v2105
      %v2108 = vadd.f32 %v2099, %v2105
      %vm2109 = vcmp.ge.f32.partialorder %v2107, 0.0
      %vm2110 = vcmp.ge.f32.partialorder %v2108, 0.0
      %v2111 = vmul.f32 %v2107, 0.01
      %v2112 = vmul.f32 %v2108, 0.01
      %v2113 = vsel %vm2109, %v2107, %v2111
      %v2114 = vsel %vm2110, %v2108, %v2112
      %v2131 = vrot.slane %v1720, 7
      %v2132 = vsel %vm1812, %v2131, %v1719
      %v2133 = vrot.slane %v1721, 6
      %v2134 = vsel %vm1815, %v2133, %v2132
      %v2135 = vrot.slane %v1722, 5
      %v2136 = vsel %vm1818, %v2135, %v2134
      %v2137 = vrot.slane %v1723, 4
      %v2138 = vsel %vm1821, %v2137, %v2136
      %v2139 = vrot.slane %v1724, 3
      %v2140 = vsel %vm1824, %v2139, %v2138
      %v2141 = vrot.slane %v1725, 2
      %v2142 = vsel %vm1827, %v2141, %v2140
      %v2143 = vrot.slane %v1726, 1
      %v2144 = vsel %vm1830, %v2143, %v2142
      %v2145 = vrot.slane %v1728, 7
      %v2146 = vsel %vm1812, %v2145, %v1727
      %v2147 = vrot.slane %v1729, 6
      %v2148 = vsel %vm1815, %v2147, %v2146
      %v2149 = vrot.slane %v1730, 5
      %v2150 = vsel %vm1818, %v2149, %v2148
      %v2151 = vrot.slane %v1731, 4
      %v2152 = vsel %vm1821, %v2151, %v2150
      %v2153 = vrot.slane %v1732, 3
      %v2154 = vsel %vm1824, %v2153, %v2152
      %v2155 = vrot.slane %v1733, 2
      %v2156 = vsel %vm1827, %v2155, %v2154
      %v2157 = vrot.slane %v1734, 1
      %v2158 = vsel %vm1830, %v2157, %v2156
      %2159 = vrot.lane.b32.xlu0 %v2144, 32
      %v2160 = vpop.permute.xlu0 %2159
      %2161 = vrot.lane.b32.xlu0 %v2158, 32
      %v2162 = vpop.permute.xlu0 %2161
      %v2181 = vrot.slane %v1736, 7
      %v2182 = vsel %vm1812, %v2181, %v1735
      %v2183 = vrot.slane %v1737, 6
      %v2184 = vsel %vm1815, %v2183, %v2182
      %v2185 = vrot.slane %v1738, 5
      %v2186 = vsel %vm1818, %v2185, %v2184
      %v2187 = vrot.slane %v1739, 4
      %v2188 = vsel %vm1821, %v2187, %v2186
      %v2189 = vrot.slane %v1740, 3
      %v2190 = vsel %vm1824, %v2189, %v2188
      %v2191 = vrot.slane %v1741, 2
      %v2192 = vsel %vm1827, %v2191, %v2190
      %v2193 = vrot.slane %v1742, 1
      %v2194 = vsel %vm1830, %v2193, %v2192
      %v2195 = vrot.slane %v1744, 7
      %v2196 = vsel %vm1812, %v2195, %v1743
      %v2197 = vrot.slane %v1745, 6
      %v2198 = vsel %vm1815, %v2197, %v2196
      %v2199 = vrot.slane %v1746, 5
      %v2200 = vsel %vm1818, %v2199, %v2198
      %v2201 = vrot.slane %v1747, 4
      %v2202 = vsel %vm1821, %v2201, %v2200
      %v2203 = vrot.slane %v1748, 3
      %v2204 = vsel %vm1824, %v2203, %v2202
      %v2205 = vrot.slane %v1749, 2
      %v2206 = vsel %vm1827, %v2205, %v2204
      %v2207 = vrot.slane %v1750, 1
      %v2208 = vsel %vm1830, %v2207, %v2206
      %2209 = vrot.lane.b32.xlu0 %v2194, 64
      %v2210 = vpop.permute.xlu0 %2209
      %2211 = vrot.lane.b32.xlu0 %v2208, 64
      %v2212 = vpop.permute.xlu0 %2211
      %v2215 = vsel %vm1859, %v2113, %v2160
      %v2216 = vsel %vm1859, %v2114, %v2162
      %vm2217 = vcmask 523264
      %v2218 = vsel %vm2217, %v2215, %v2210
      %v2219 = vsel %vm2217, %v2216, %v2212
      %vm2220 = vcmask 785408
      %2221 = vst.msk [vmem:[#allocation6] sm:$0xff] %vm2220, %v2218
      %2222 = vst.msk [vmem:[#allocation6 + $0x8] sm:$0xff] %vm2220, %v2219
    $region45: #{tpu_custom_call.1} parent=1 // pred_fallthru
      _
    // Predicated region
    $region46: #{tpu_custom_call.1} parent=1 // pred_check
      _
    $region47: #{tpu_custom_call.1} parent=1 // pred_check_branch
      %2224 = sbr.rel (0) target = $region49
    $region48: #{tpu_custom_call.1} parent=1 // pred_region
      %s2226 = ssub.s32 256, 256
      %2227 = vsyncadd [#allocation5], %s2226
      %s2228 = sshll.u32 [#allocation6], 4
      %s2229 = int_to_ptr.vmem [resolvable:$true] %s2228
      %2234 = dma.vmem_to_hbm [thread:$0]  %s2229, 256, %s8, [#allocation5], 128, 128, 8
    $region49: #{tpu_custom_call.1} parent=1 // pred_fallthru
      _
    // Predicated region
    $region50: #{tpu_custom_call.1} parent=1 // pred_check
      _
    $region51: #{tpu_custom_call.1} parent=1 // pred_check_branch
      %2236 = sbr.rel (0) target = $region53
    $region52: #{tpu_custom_call.1} parent=1 // pred_region
      %2237 = dma.done [#allocation5], 256
    $region53: #{tpu_custom_call.1} parent=1 // pred_fallthru
      _
    %2238 = vsyncpa [#allocation4], 1
    %2239 = vsyncpa [#allocation5], 1

</llo_original>
